<compile_context>
chip_gen: v6e
topology: v6e:2x2x1
jax: 0.10.0
libtpu: 0.0.40
codegen_flags: <defaults>
</compile_context>

<pallas_src>
import functools

import jax
import jax.numpy as jnp
import numpy as np
from jax.experimental import pallas as pl
from jax.experimental.pallas import tpu as pltpu

# ------------------ small test configuration (scaled-down ViT) ------------------
LATENT = 64          # latent_size   (768 in the reference)
NUM_HEADS = 4        # num_heads     (12 in the reference)
PATCH = 8            # patch_size    (16 in the reference)
N_CHANNELS = 3
NUM_CLASSES = 10
NUM_ENCODERS = 2     # num_encoders  (12 in the reference)
BATCH = 1
IMG = 32             # image size    (224 in the reference)
EPS = 1e-5           # nn.LayerNorm default eps
HEAD_PAD = 128       # lane-dense padded width for the classifier output

N_PATCH = (IMG // PATCH) ** 2          # 16 patches per image
SEQ = N_PATCH + 1                      # 17 tokens (cls + patches)
ROWS = BATCH * SEQ                     # 17 activation rows
ROWS_PAD = ((ROWS + 7) // 8) * 8       # 24: sublane-aligned row count
IN_DIM = PATCH * PATCH * N_CHANNELS    # 192


# ------------------------------ exact GELU helpers -------------------------------
# Exact (erf) GELU inside the kernel.  Same Cephes-style rational approximation
# XLA itself uses for f32 erf, so nn.GELU(approximate='none') semantics are kept.
_ERF_ALPHA = (0.00022905065861350646, 0.0034082910107109506,
              0.050955695062380861, 0.18520832239976145, 1.128379143519084)
_ERF_BETA = (-1.1791602954361697e-07, 2.3547966471313185e-05,
             0.0010179625278914885, 0.014070470171167667,
             0.11098505178285362, 0.49746925110067538, 1.0)


def _poly(x2, coeffs):
    acc = coeffs[0]
    for c in coeffs[1:]:
        acc = acc * x2 + c
    return acc


def _erf_f32(x):
    c = 3.832506856900711          # erfinv(1 - 2^-23): clamp range used by XLA
    xc = jnp.clip(x, -c, c)
    x2 = xc * xc
    return xc * _poly(x2, _ERF_ALPHA) / _poly(x2, _ERF_BETA)


def _gelu_exact(x):
    return 0.5 * x * (1.0 + _erf_f32(x * 0.7071067811865476))


# ------------------------------ fused Pallas kernel ------------------------------
def _vit_kernel(patches_ref, pw_ref, add_ref,
                lng_ref, lnb_ref, wqkv_ref, bqkv_ref, wo_ref, bo_ref,
                w1_ref, b1_ref, w2_ref, b2_ref,
                hg_ref, hb_ref, hw1_ref, hb1_ref, hw2_ref, hb2_ref,
                o_ref, act_ref, *, num_heads, seq_l):
    """Grid step l == one encoder layer; embedding at l==0, head at l==last."""
    l = pl.program_id(0)
    last = pl.num_programs(0) - 1
    E = pw_ref.shape[1]

    # ---- step 0: fused patch embedding (proj + bias + positional + cls token) ----
    # add_ref already contains: row 0 = class_token + pos[0];
    # rows 1..N_PATCH = proj_b + pos[1:]; pad rows = 0.  Row 0 / pad rows of the
    # padded patch matrix are zero, so the matmul contributes nothing there.
    @pl.when(l == 0)
    def _():
        act_ref[...] = (jnp.dot(patches_ref[...], pw_ref[...],
                                preferred_element_type=jnp.float32)
                        + add_ref[...])

    # ---- encoder block l (activation stays resident in VMEM scratch) ----
    x = act_ref[...]
    g = lng_ref[...]
    bln = lnb_ref[...]

    def ln(t, gg, bb):
        mu = jnp.mean(t, axis=-1, keepdims=True)
        var = jnp.mean(jnp.square(t - mu), axis=-1, keepdims=True)
        return (t - mu) * jax.lax.rsqrt(var + EPS) * gg + bb

    # multi-head self-attention (nn.MultiheadAttention, batch_first=False:
    # torch seq-len axis == image batch B, torch batch axis == tokens S).
    xn = ln(x, g, bln)
    qkv = (jnp.dot(xn, wqkv_ref[...], preferred_element_type=jnp.float32)
           + bqkv_ref[...])
    if seq_l == 1:
        # seq-len 1 => softmax over a single key is exactly 1.0 => ctx == V.
        ctx = qkv[:, 2 * E:]
    else:
        # TODO(synk): general B>1 path (dead at BATCH==1) assumes rows % seq_l == 0
        #             and per-batch contiguous padding; exact softmax division.
        rows = x.shape[0]
        H = num_heads
        dh = E // H
        n = rows // seq_l
        q = jnp.transpose(qkv[:, :E].reshape(seq_l, n * H, dh), (1, 0, 2))
        k = jnp.transpose(qkv[:, E:2 * E].reshape(seq_l, n * H, dh), (1, 0, 2))
        v = jnp.transpose(qkv[:, 2 * E:].reshape(seq_l, n * H, dh), (1, 0, 2))
        s = jnp.einsum('bld,bmd->blm', q, k,
                       preferred_element_type=jnp.float32) * (1.0 / float(np.sqrt(dh)))
        s = s - jnp.max(s, axis=-1, keepdims=True)
        e = jnp.exp(s)
        p = e / jnp.sum(e, axis=-1, keepdims=True)
        ctx = jnp.einsum('blm,bmd->bld', p, v, preferred_element_type=jnp.float32)
        ctx = jnp.transpose(ctx, (1, 0, 2)).reshape(rows, E)

    attn = jnp.dot(ctx, wo_ref[...], preferred_element_type=jnp.float32) + bo_ref[...]
    first = x + attn                                   # fused residual add

    # MLP with fused exact GELU
    xn2 = ln(first, g, bln)                            # module reuses self.norm
    hdn = jnp.dot(xn2, w1_ref[...], preferred_element_type=jnp.float32) + b1_ref[...]
    hdn = _gelu_exact(hdn)
    mlp = jnp.dot(hdn, w2_ref[...], preferred_element_type=jnp.float32) + b2_ref[...]
    act_ref[...] = mlp + first

    # ---- last step: fused MLP head, written as a lane-dense (ROWS_PAD,128) slab ----
    @pl.when(l == last)
    def _():
        t = act_ref[...]
        tn = ln(t, hg_ref[...], hb_ref[...])
        h1 = jnp.dot(tn, hw1_ref[...], preferred_element_type=jnp.float32) + hb1_ref[...]
        y = jnp.dot(h1, hw2_ref[...], preferred_element_type=jnp.float32) + hb2_ref[...]
        o_ref[...] = y.astype(o_ref.dtype)


def _resident_spec(shape):
    """Whole array, same block every grid step (fetched once, stays in VMEM)."""
    zeros = (0,) * len(shape)
    return pl.BlockSpec(shape, lambda l: zeros)


def _layer_spec(shape):
    """One layer slab per grid step; Pallas double-buffers the next layer."""
    return pl.BlockSpec((None,) + tuple(shape[1:]), lambda l: (l, 0, 0))


def vit_fused(patches_pad, pp):
    rows_pad, in_dim = patches_pad.shape
    E = LATENT

    shared_pre = (patches_pad, pp["proj_w"], pp["embed_add"])
    per_layer = (pp["ln_g"], pp["ln_b"], pp["in_proj_w"], pp["in_proj_b"],
                 pp["out_proj_w"], pp["out_proj_b"],
                 pp["mlp_w1"], pp["mlp_b1"], pp["mlp_w2"], pp["mlp_b2"])
    shared_post = (pp["head_ln_g"], pp["head_ln_b"], pp["head_w1"], pp["head_b1"],
                   pp["head_w2"], pp["head_b2"])
    args = shared_pre + per_layer + shared_post

    in_specs = ([_resident_spec(a.shape) for a in shared_pre]
                + [_layer_spec(a.shape) for a in per_layer]
                + [_resident_spec(a.shape) for a in shared_post])

    flops = (2 * rows_pad * in_dim * E
             + NUM_ENCODERS * 2 * rows_pad * E * (3 * E + E + 4 * E + 4 * E)
             + 2 * rows_pad * E * (E + HEAD_PAD))
    bytes_accessed = 4 * (sum(int(np.prod(a.shape)) for a in args)
                          + rows_pad * HEAD_PAD)
    cost = pl.CostEstimate(flops=flops,
                           transcendentals=(2 * NUM_ENCODERS + 1) * rows_pad,
                           bytes_accessed=bytes_accessed)

    return pl.pallas_call(
        functools.partial(_vit_kernel, num_heads=NUM_HEADS, seq_l=BATCH),
        out_shape=jax.ShapeDtypeStruct((rows_pad, HEAD_PAD), patches_pad.dtype),
        grid_spec=pltpu.PrefetchScalarGridSpec(
            num_scalar_prefetch=0,
            grid=(NUM_ENCODERS,),
            in_specs=in_specs,
            out_specs=_resident_spec((rows_pad, HEAD_PAD)),
            scratch_shapes=[pltpu.VMEM((rows_pad, E), jnp.float32)],
        ),
        compiler_params=pltpu.CompilerParams(
            dimension_semantics=("arbitrary",)),   # layers are sequential
        cost_estimate=cost,
    )(*args)


# ------------------------------ full forward pass --------------------------------
def vit_forward(x, packed):
    B, C, H, W = x.shape
    P = PATCH
    h, w = H // P, W // P
    # einops: 'b c (h h1) (w w1) -> b (h w) (h1 w1 c)'
    patches = x.reshape(B, C, h, P, w, P)
    patches = jnp.transpose(patches, (0, 2, 4, 3, 5, 1)).reshape(B * h * w, P * P * C)
    # Row 0 = class-token slot (zeros; projection contributes nothing there),
    # trailing rows pad the token count up to a sublane-aligned multiple of 8.
    patches_pad = jnp.pad(patches,
                          ((1, ROWS_PAD - 1 - patches.shape[0]), (0, 0)))
    y = vit_fused(patches_pad, packed)                 # (ROWS_PAD, HEAD_PAD)
    return y[:ROWS, :NUM_CLASSES]                      # reproduces MLP_head(enc[0, :])


# -------------------------- parameter packing (done once) ------------------------
def pack_params(params):
    """Stack per-layer weights on a leading layer axis; precompute pads/adds."""
    E = LATENT
    L = NUM_ENCODERS
    enc = params["encoders"]
    stack = lambda k: jnp.stack([p[k] for p in enc], axis=0)

    pos = params["pos_embedding"]                      # (B, S, E), B == 1
    row0 = (params["class_token"] + pos[:, :1, :]).reshape(1, E)
    mid = params["proj_b"].reshape(1, E) + pos[:, 1:, :].reshape(N_PATCH, E)
    pad = jnp.zeros((ROWS_PAD - 1 - N_PATCH, E), jnp.float32)
    embed_add = jnp.concatenate([row0, mid, pad], axis=0)

    return {
        "proj_w": params["proj_w"],
        "embed_add": embed_add,
        "ln_g": stack("ln_g").reshape(L, 1, E),
        "ln_b": stack("ln_b").reshape(L, 1, E),
        "in_proj_w": stack("in_proj_w"),
        "in_proj_b": stack("in_proj_b").reshape(L, 1, 3 * E),
        "out_proj_w": stack("out_proj_w"),
        "out_proj_b": stack("out_proj_b").reshape(L, 1, E),
        "mlp_w1": stack("mlp_w1"),
        "mlp_b1": stack("mlp_b1").reshape(L, 1, 4 * E),
        "mlp_w2": stack("mlp_w2"),
        "mlp_b2": stack("mlp_b2").reshape(L, 1, E),
        "head_ln_g": params["head_ln_g"].reshape(1, E),
        "head_ln_b": params["head_ln_b"].reshape(1, E),
        "head_w1": params["head_w1"],
        "head_b1": params["head_b1"].reshape(1, E),
        "head_w2": jnp.pad(params["head_w2"],
                           ((0, 0), (0, HEAD_PAD - NUM_CLASSES))),
        "head_b2": jnp.pad(params["head_b2"],
                           (0, HEAD_PAD - NUM_CLASSES)).reshape(1, HEAD_PAD),
    }


# ------------------------- deterministic parameter init -------------------------
def init_params(key):
    ks = jax.random.split(key, 8 + NUM_ENCODERS)

    def w(k, shape, scale=0.02):
        return (scale * jax.random.normal(k, shape)).astype(jnp.float32)

    params = {
        "proj_w": w(ks[0], (IN_DIM, LATENT)),
        "proj_b": jnp.zeros((LATENT,), jnp.float32),
        "class_token": w(ks[1], (BATCH, 1, LATENT), 1.0),
        "pos_embedding": w(ks[2], (BATCH, SEQ, LATENT), 1.0),
        "head_ln_g": jnp.ones((LATENT,), jnp.float32),
        "head_ln_b": jnp.zeros((LATENT,), jnp.float32),
        "head_w1": w(ks[3], (LATENT, LATENT)),
        "head_b1": jnp.zeros((LATENT,), jnp.float32),
        "head_w2": w(ks[4], (LATENT, NUM_CLASSES)),
        "head_b2": jnp.zeros((NUM_CLASSES,), jnp.float32),
        "encoders": [],
    }
    for i in range(NUM_ENCODERS):
        ek = jax.random.split(ks[8 + i], 4)
        params["encoders"].append({
            "ln_g": jnp.ones((LATENT,), jnp.float32),
            "ln_b": jnp.zeros((LATENT,), jnp.float32),
            "in_proj_w": w(ek[0], (LATENT, 3 * LATENT)),
            "in_proj_b": jnp.zeros((3 * LATENT,), jnp.float32),
            "out_proj_w": w(ek[1], (LATENT, LATENT)),
            "out_proj_b": jnp.zeros((LATENT,), jnp.float32),
            "mlp_w1": w(ek[2], (LATENT, 4 * LATENT)),
            "mlp_b1": jnp.zeros((4 * LATENT,), jnp.float32),
            "mlp_w2": w(ek[3], (4 * LATENT, LATENT)),
            "mlp_b2": jnp.zeros((LATENT,), jnp.float32),
        })
    return params


# ------------------------------ pure-JAX reference -------------------------------
def _ref_linear(x, w, b):
    return x @ w + b


def _ref_ln(x, g, b):
    mu = jnp.mean(x, -1, keepdims=True)
    var = jnp.mean((x - mu) ** 2, -1, keepdims=True)
    return (x - mu) * jax.lax.rsqrt(var + EPS) * g + b


def _ref_mha(x, p):
    L, N, E = x.shape
    H = NUM_HEADS
    dh = E // H
    qkv = _ref_linear(x.reshape(L * N, E), p["in_proj_w"], p["in_proj_b"])
    qkv = qkv.reshape(L, N, 3, H, dh)
    q = jnp.transpose(qkv[:, :, 0], (1, 2, 0, 3))
    k = jnp.transpose(qkv[:, :, 1], (1, 2, 0, 3))
    v = jnp.transpose(qkv[:, :, 2], (1, 2, 0, 3))
    s = jnp.einsum('nhld,nhmd->nhlm', q, k) / float(np.sqrt(dh))
    a = jax.nn.softmax(s, axis=-1)
    o = jnp.einsum('nhlm,nhmd->nhld', a, v)
    o = jnp.transpose(o, (2, 0, 1, 3)).reshape(L * N, E)
    return _ref_linear(o, p["out_proj_w"], p["out_proj_b"]).reshape(L, N, E)


def ref_forward(x, params):
    B, C, H, W = x.shape
    P = PATCH
    h, w = H // P, W // P
    patches = jnp.transpose(x.reshape(B, C, h, P, w, P), (0, 2, 4, 3, 5, 1))
    patches = patches.reshape(B, h * w, P * P * C)
    proj = _ref_linear(patches.reshape(B * h * w, -1),
                       params["proj_w"], params["proj_b"]).reshape(B, h * w, LATENT)
    tok = jnp.concatenate([params["class_token"], proj], axis=1) + params["pos_embedding"]
    enc = tok
    for p in params["encoders"]:
        B_, S_, E_ = enc.shape
        xn = _ref_ln(enc.reshape(B_ * S_, E_), p["ln_g"], p["ln_b"]).reshape(B_, S_, E_)
        first = enc + _ref_mha(xn, p)
        xn2 = _ref_ln(first.reshape(B_ * S_, E_), p["ln_g"], p["ln_b"]).reshape(B_, S_, E_)
        hdn = jax.nn.gelu(_ref_linear(xn2.reshape(B_ * S_, E_), p["mlp_w1"], p["mlp_b1"]),
                          approximate=False)
        enc = _ref_linear(hdn, p["mlp_w2"], p["mlp_b2"]).reshape(B_, S_, E_) + first
    cls = enc[0, :]
    y = _ref_ln(cls, params["head_ln_g"], params["head_ln_b"])
    y = _ref_linear(y, params["head_w1"], params["head_b1"])
    return _ref_linear(y, params["head_w2"], params["head_b2"])


# --------------------------------------- main -----------------------------------
if __name__ == "__main__":
    key = jax.random.PRNGKey(0)
    pkey, xkey = jax.random.split(key)
    params = init_params(pkey)
    packed = pack_params(params)          # weight stacking / padding: done once
    x = jax.random.normal(xkey, (BATCH, N_CHANNELS, IMG, IMG), jnp.float32)

    out = jax.jit(vit_forward)(x, packed)
    out = jax.block_until_ready(out)

    assert out.shape == (SEQ, NUM_CLASSES), out.shape

    ref = ref_forward(x, params)
    np.testing.assert_allclose(np.asarray(out), np.asarray(ref), rtol=2e-3, atol=2e-3)

    print("KERNEL_OK")
</pallas_src>

<mosaic_0001>
module attributes {stable_mosaic.version = 11 : i64} {
  func.func @_vit_kernel(%arg0: i32, %arg1: memref<24x192xf32, #tpu.memory_space<vmem>>, %arg2: memref<192x64xf32, #tpu.memory_space<vmem>>, %arg3: memref<24x64xf32, #tpu.memory_space<vmem>>, %arg4: memref<1x1x64xf32, #tpu.memory_space<vmem>>, %arg5: memref<1x1x64xf32, #tpu.memory_space<vmem>>, %arg6: memref<1x64x192xf32, #tpu.memory_space<vmem>>, %arg7: memref<1x1x192xf32, #tpu.memory_space<vmem>>, %arg8: memref<1x64x64xf32, #tpu.memory_space<vmem>>, %arg9: memref<1x1x64xf32, #tpu.memory_space<vmem>>, %arg10: memref<1x64x256xf32, #tpu.memory_space<vmem>>, %arg11: memref<1x1x256xf32, #tpu.memory_space<vmem>>, %arg12: memref<1x256x64xf32, #tpu.memory_space<vmem>>, %arg13: memref<1x1x64xf32, #tpu.memory_space<vmem>>, %arg14: memref<1x64xf32, #tpu.memory_space<vmem>>, %arg15: memref<1x64xf32, #tpu.memory_space<vmem>>, %arg16: memref<64x64xf32, #tpu.memory_space<vmem>>, %arg17: memref<1x64xf32, #tpu.memory_space<vmem>>, %arg18: memref<64x128xf32, #tpu.memory_space<vmem>>, %arg19: memref<1x128xf32, #tpu.memory_space<vmem>>, %arg20: memref<24x128xf32, #tpu.memory_space<vmem>>, %arg21: memref<24x64xf32, #tpu.memory_space<vmem>>) attributes {dimension_semantics = [#tpu.dimension_semantics<arbitrary>], iteration_bounds = array<i64: 2>, scalar_prefetch = 0 : i64, scratch_operands = 1 : i64, tpu.core_type = #tpu.core_type<tc>, window_params = [{pipeline_mode = #tpu.pipeline_mode<synchronous>, transform_indices = @transform_0, window_bounds = array<i64: 24, 192>}, {pipeline_mode = #tpu.pipeline_mode<synchronous>, transform_indices = @transform_1, window_bounds = array<i64: 192, 64>}, {pipeline_mode = #tpu.pipeline_mode<synchronous>, transform_indices = @transform_2, window_bounds = array<i64: 24, 64>}, {transform_indices = @transform_3, window_bounds = array<i64: 1, 1, 64>}, {transform_indices = @transform_4, window_bounds = array<i64: 1, 1, 64>}, {transform_indices = @transform_5, window_bounds = array<i64: 1, 64, 192>}, {transform_indices = @transform_6, window_bounds = array<i64: 1, 1, 192>}, {transform_indices = @transform_7, window_bounds = array<i64: 1, 64, 64>}, {transform_indices = @transform_8, window_bounds = array<i64: 1, 1, 64>}, {transform_indices = @transform_9, window_bounds = array<i64: 1, 64, 256>}, {transform_indices = @transform_10, window_bounds = array<i64: 1, 1, 256>}, {transform_indices = @transform_11, window_bounds = array<i64: 1, 256, 64>}, {transform_indices = @transform_12, window_bounds = array<i64: 1, 1, 64>}, {pipeline_mode = #tpu.pipeline_mode<synchronous>, transform_indices = @transform_13, window_bounds = array<i64: 1, 64>}, {pipeline_mode = #tpu.pipeline_mode<synchronous>, transform_indices = @transform_14, window_bounds = array<i64: 1, 64>}, {pipeline_mode = #tpu.pipeline_mode<synchronous>, transform_indices = @transform_15, window_bounds = array<i64: 64, 64>}, {pipeline_mode = #tpu.pipeline_mode<synchronous>, transform_indices = @transform_16, window_bounds = array<i64: 1, 64>}, {pipeline_mode = #tpu.pipeline_mode<synchronous>, transform_indices = @transform_17, window_bounds = array<i64: 64, 128>}, {pipeline_mode = #tpu.pipeline_mode<synchronous>, transform_indices = @transform_18, window_bounds = array<i64: 1, 128>}, {pipeline_mode = #tpu.pipeline_mode<synchronous>, transform_indices = @transform_19, window_bounds = array<i64: 24, 128>}]} {
    %c0_i32 = arith.constant 0 : i32
    %0 = arith.cmpi eq, %arg0, %c0_i32 : i32
    %1 = arith.extui %0 : i1 to i32
    %c0_i32_0 = arith.constant 0 : i32
    %2 = arith.cmpi ne, %1, %c0_i32_0 : i32
    scf.if %2 {
      %c0_65 = arith.constant 0 : index
      %c0_66 = arith.constant 0 : index
      %133 = vector.load %arg1[%c0_65, %c0_66] : memref<24x192xf32, #tpu.memory_space<vmem>>, vector<24x192xf32>
      %c0_67 = arith.constant 0 : index
      %c0_68 = arith.constant 0 : index
      %134 = vector.load %arg2[%c0_67, %c0_68] : memref<192x64xf32, #tpu.memory_space<vmem>>, vector<192x64xf32>
      %cst_69 = arith.constant dense<0.000000e+00> : vector<24x64xf32>
      %135 = tpu.matmul %133, %134, %cst_69 {dimension_numbers = #tpu.dot_dimension_numbers<[1], [0], [0], [1], [0, 0, 1, 1], [], []>} : vector<24x192xf32>, vector<192x64xf32>, vector<24x64xf32> -> vector<24x64xf32>
      %c0_70 = arith.constant 0 : index
      %c0_71 = arith.constant 0 : index
      %136 = vector.load %arg3[%c0_70, %c0_71] : memref<24x64xf32, #tpu.memory_space<vmem>>, vector<24x64xf32>
      %137 = arith.addf %135, %136 : vector<24x64xf32>
      %c0_72 = arith.constant 0 : index
      %c0_73 = arith.constant 0 : index
      %138 = vector.load %arg21[%c0_72, %c0_73] : memref<24x64xf32, #tpu.memory_space<vmem>>, vector<24x64xf32>
      tpu.vector_store %arg21[%c0_72, %c0_73], %137 {strides = array<i32>} : memref<24x64xf32, #tpu.memory_space<vmem>>, vector<24x64xf32>,
    } else {
    }
    %c0 = arith.constant 0 : index
    %c0_1 = arith.constant 0 : index
    %3 = vector.load %arg21[%c0, %c0_1] : memref<24x64xf32, #tpu.memory_space<vmem>>, vector<24x64xf32>
    %c0_2 = arith.constant 0 : index
    %c0_3 = arith.constant 0 : index
    %c0_4 = arith.constant 0 : index
    %4 = vector.load %arg4[%c0_2, %c0_3, %c0_4] : memref<1x1x64xf32, #tpu.memory_space<vmem>>, vector<1x1x64xf32>
    %5 = vector.shape_cast %4 : vector<1x1x64xf32> to vector<1x64xf32>
    %c0_5 = arith.constant 0 : index
    %c0_6 = arith.constant 0 : index
    %c0_7 = arith.constant 0 : index
    %6 = vector.load %arg5[%c0_5, %c0_6, %c0_7] : memref<1x1x64xf32, #tpu.memory_space<vmem>>, vector<1x1x64xf32>
    %7 = vector.shape_cast %6 : vector<1x1x64xf32> to vector<1x64xf32>
    %cst = arith.constant dense<0.000000e+00> : vector<24xf32>
    %8 = vector.multi_reduction <add>, %3, %cst [1] : vector<24x64xf32> to vector<24xf32>
    %9 = vector.shape_cast %8 : vector<24xf32> to vector<24x1xf32>
    %cst_8 = arith.constant 6.400000e+01 : f32
    %10 = vector.broadcast %cst_8 : f32 to vector<24x1xf32>
    %11 = arith.divf %9, %10 : vector<24x1xf32>
    %12 = vector.broadcast %11 : vector<24x1xf32> to vector<24x64xf32>
    %13 = arith.subf %3, %12 : vector<24x64xf32>
    %14 = arith.mulf %13, %13 : vector<24x64xf32>
    %cst_9 = arith.constant dense<0.000000e+00> : vector<24xf32>
    %15 = vector.multi_reduction <add>, %14, %cst_9 [1] : vector<24x64xf32> to vector<24xf32>
    %16 = vector.shape_cast %15 : vector<24xf32> to vector<24x1xf32>
    %cst_10 = arith.constant 6.400000e+01 : f32
    %17 = vector.broadcast %cst_10 : f32 to vector<24x1xf32>
    %18 = arith.divf %16, %17 : vector<24x1xf32>
    %19 = vector.broadcast %11 : vector<24x1xf32> to vector<24x64xf32>
    %20 = arith.subf %3, %19 : vector<24x64xf32>
    %cst_11 = arith.constant 9.99999974E-6 : f32
    %21 = vector.broadcast %cst_11 : f32 to vector<24x1xf32>
    %22 = arith.addf %18, %21 : vector<24x1xf32>
    %23 = math.rsqrt %22 : vector<24x1xf32>
    %24 = vector.broadcast %23 : vector<24x1xf32> to vector<24x64xf32>
    %25 = arith.mulf %20, %24 : vector<24x64xf32>
    %26 = vector.broadcast %5 : vector<1x64xf32> to vector<24x64xf32>
    %27 = arith.mulf %25, %26 : vector<24x64xf32>
    %28 = vector.broadcast %7 : vector<1x64xf32> to vector<24x64xf32>
    %29 = arith.addf %27, %28 : vector<24x64xf32>
    %c0_12 = arith.constant 0 : index
    %c0_13 = arith.constant 0 : index
    %c0_14 = arith.constant 0 : index
    %30 = vector.load %arg6[%c0_12, %c0_13, %c0_14] : memref<1x64x192xf32, #tpu.memory_space<vmem>>, vector<1x64x192xf32>
    %31 = vector.shape_cast %30 : vector<1x64x192xf32> to vector<64x192xf32>
    %cst_15 = arith.constant dense<0.000000e+00> : vector<24x192xf32>
    %32 = tpu.matmul %29, %31, %cst_15 {dimension_numbers = #tpu.dot_dimension_numbers<[1], [0], [0], [1], [0, 0, 1, 1], [], []>} : vector<24x64xf32>, vector<64x192xf32>, vector<24x192xf32> -> vector<24x192xf32>
    %c0_16 = arith.constant 0 : index
    %c0_17 = arith.constant 0 : index
    %c0_18 = arith.constant 0 : index
    %33 = vector.load %arg7[%c0_16, %c0_17, %c0_18] : memref<1x1x192xf32, #tpu.memory_space<vmem>>, vector<1x1x192xf32>
    %34 = vector.shape_cast %33 : vector<1x1x192xf32> to vector<1x192xf32>
    %35 = vector.broadcast %34 : vector<1x192xf32> to vector<24x192xf32>
    %36 = arith.addf %32, %35 : vector<24x192xf32>
    %37 = vector.extract_strided_slice %36 {offsets = [0, 128], sizes = [24, 64], strides = [1, 1]} : vector<24x192xf32> to vector<24x64xf32>
    %c0_19 = arith.constant 0 : index
    %c0_20 = arith.constant 0 : index
    %c0_21 = arith.constant 0 : index
    %38 = vector.load %arg8[%c0_19, %c0_20, %c0_21] : memref<1x64x64xf32, #tpu.memory_space<vmem>>, vector<1x64x64xf32>
    %39 = vector.shape_cast %38 : vector<1x64x64xf32> to vector<64x64xf32>
    %cst_22 = arith.constant dense<0.000000e+00> : vector<24x64xf32>
    %40 = tpu.matmul %37, %39, %cst_22 {dimension_numbers = #tpu.dot_dimension_numbers<[1], [0], [0], [1], [0, 0, 1, 1], [], []>} : vector<24x64xf32>, vector<64x64xf32>, vector<24x64xf32> -> vector<24x64xf32>
    %c0_23 = arith.constant 0 : index
    %c0_24 = arith.constant 0 : index
    %c0_25 = arith.constant 0 : index
    %41 = vector.load %arg9[%c0_23, %c0_24, %c0_25] : memref<1x1x64xf32, #tpu.memory_space<vmem>>, vector<1x1x64xf32>
    %42 = vector.shape_cast %41 : vector<1x1x64xf32> to vector<1x64xf32>
    %43 = vector.broadcast %42 : vector<1x64xf32> to vector<24x64xf32>
    %44 = arith.addf %40, %43 : vector<24x64xf32>
    %45 = arith.addf %3, %44 : vector<24x64xf32>
    %cst_26 = arith.constant dense<0.000000e+00> : vector<24xf32>
    %46 = vector.multi_reduction <add>, %45, %cst_26 [1] : vector<24x64xf32> to vector<24xf32>
    %47 = vector.shape_cast %46 : vector<24xf32> to vector<24x1xf32>
    %cst_27 = arith.constant 6.400000e+01 : f32
    %48 = vector.broadcast %cst_27 : f32 to vector<24x1xf32>
    %49 = arith.divf %47, %48 : vector<24x1xf32>
    %50 = vector.broadcast %49 : vector<24x1xf32> to vector<24x64xf32>
    %51 = arith.subf %45, %50 : vector<24x64xf32>
    %52 = arith.mulf %51, %51 : vector<24x64xf32>
    %cst_28 = arith.constant dense<0.000000e+00> : vector<24xf32>
    %53 = vector.multi_reduction <add>, %52, %cst_28 [1] : vector<24x64xf32> to vector<24xf32>
    %54 = vector.shape_cast %53 : vector<24xf32> to vector<24x1xf32>
    %cst_29 = arith.constant 6.400000e+01 : f32
    %55 = vector.broadcast %cst_29 : f32 to vector<24x1xf32>
    %56 = arith.divf %54, %55 : vector<24x1xf32>
    %57 = vector.broadcast %49 : vector<24x1xf32> to vector<24x64xf32>
    %58 = arith.subf %45, %57 : vector<24x64xf32>
    %cst_30 = arith.constant 9.99999974E-6 : f32
    %59 = vector.broadcast %cst_30 : f32 to vector<24x1xf32>
    %60 = arith.addf %56, %59 : vector<24x1xf32>
    %61 = math.rsqrt %60 : vector<24x1xf32>
    %62 = vector.broadcast %61 : vector<24x1xf32> to vector<24x64xf32>
    %63 = arith.mulf %58, %62 : vector<24x64xf32>
    %64 = vector.broadcast %5 : vector<1x64xf32> to vector<24x64xf32>
    %65 = arith.mulf %63, %64 : vector<24x64xf32>
    %66 = vector.broadcast %7 : vector<1x64xf32> to vector<24x64xf32>
    %67 = arith.addf %65, %66 : vector<24x64xf32>
    %c0_31 = arith.constant 0 : index
    %c0_32 = arith.constant 0 : index
    %c0_33 = arith.constant 0 : index
    %68 = vector.load %arg10[%c0_31, %c0_32, %c0_33] : memref<1x64x256xf32, #tpu.memory_space<vmem>>, vector<1x64x256xf32>
    %69 = vector.shape_cast %68 : vector<1x64x256xf32> to vector<64x256xf32>
    %cst_34 = arith.constant dense<0.000000e+00> : vector<24x256xf32>
    %70 = tpu.matmul %67, %69, %cst_34 {dimension_numbers = #tpu.dot_dimension_numbers<[1], [0], [0], [1], [0, 0, 1, 1], [], []>} : vector<24x64xf32>, vector<64x256xf32>, vector<24x256xf32> -> vector<24x256xf32>
    %c0_35 = arith.constant 0 : index
    %c0_36 = arith.constant 0 : index
    %c0_37 = arith.constant 0 : index
    %71 = vector.load %arg11[%c0_35, %c0_36, %c0_37] : memref<1x1x256xf32, #tpu.memory_space<vmem>>, vector<1x1x256xf32>
    %72 = vector.shape_cast %71 : vector<1x1x256xf32> to vector<1x256xf32>
    %73 = vector.broadcast %72 : vector<1x256xf32> to vector<24x256xf32>
    %74 = arith.addf %70, %73 : vector<24x256xf32>
    %cst_38 = arith.constant 5.000000e-01 : f32
    %75 = vector.broadcast %cst_38 : f32 to vector<24x256xf32>
    %76 = arith.mulf %75, %74 : vector<24x256xf32>
    %cst_39 = arith.constant 0.707106769 : f32
    %77 = vector.broadcast %cst_39 : f32 to vector<24x256xf32>
    %78 = arith.mulf %74, %77 : vector<24x256xf32>
    %cst_40 = arith.constant -3.8325069 : f32
    %cst_41 = arith.constant 3.8325069 : f32
    %79 = vector.broadcast %cst_40 : f32 to vector<24x256xf32>
    %80 = arith.maximumf %79, %78 : vector<24x256xf32>
    %81 = vector.broadcast %cst_41 : f32 to vector<24x256xf32>
    %82 = arith.minimumf %81, %80 : vector<24x256xf32>
    %83 = arith.mulf %82, %82 : vector<24x256xf32>
    %cst_42 = arith.constant 2.29050653E-4 : f32
    %84 = vector.broadcast %cst_42 : f32 to vector<24x256xf32>
    %85 = arith.mulf %84, %83 : vector<24x256xf32>
    %cst_43 = arith.constant 0.00340829091 : f32
    %86 = vector.broadcast %cst_43 : f32 to vector<24x256xf32>
    %87 = arith.addf %85, %86 : vector<24x256xf32>
    %88 = arith.mulf %87, %83 : vector<24x256xf32>
    %cst_44 = arith.constant 0.0509556942 : f32
    %89 = vector.broadcast %cst_44 : f32 to vector<24x256xf32>
    %90 = arith.addf %88, %89 : vector<24x256xf32>
    %91 = arith.mulf %90, %83 : vector<24x256xf32>
    %cst_45 = arith.constant 0.185208321 : f32
    %92 = vector.broadcast %cst_45 : f32 to vector<24x256xf32>
    %93 = arith.addf %91, %92 : vector<24x256xf32>
    %94 = arith.mulf %93, %83 : vector<24x256xf32>
    %cst_46 = arith.constant 1.12837911 : f32
    %95 = vector.broadcast %cst_46 : f32 to vector<24x256xf32>
    %96 = arith.addf %94, %95 : vector<24x256xf32>
    %97 = arith.mulf %82, %96 : vector<24x256xf32>
    %cst_47 = arith.constant -1.17916031E-7 : f32
    %98 = vector.broadcast %cst_47 : f32 to vector<24x256xf32>
    %99 = arith.mulf %98, %83 : vector<24x256xf32>
    %cst_48 = arith.constant 2.35479656E-5 : f32
    %100 = vector.broadcast %cst_48 : f32 to vector<24x256xf32>
    %101 = arith.addf %99, %100 : vector<24x256xf32>
    %102 = arith.mulf %101, %83 : vector<24x256xf32>
    %cst_49 = arith.constant 0.00101796258 : f32
    %103 = vector.broadcast %cst_49 : f32 to vector<24x256xf32>
    %104 = arith.addf %102, %103 : vector<24x256xf32>
    %105 = arith.mulf %104, %83 : vector<24x256xf32>
    %cst_50 = arith.constant 0.0140704699 : f32
    %106 = vector.broadcast %cst_50 : f32 to vector<24x256xf32>
    %107 = arith.addf %105, %106 : vector<24x256xf32>
    %108 = arith.mulf %107, %83 : vector<24x256xf32>
    %cst_51 = arith.constant 0.110985048 : f32
    %109 = vector.broadcast %cst_51 : f32 to vector<24x256xf32>
    %110 = arith.addf %108, %109 : vector<24x256xf32>
    %111 = arith.mulf %110, %83 : vector<24x256xf32>
    %cst_52 = arith.constant 0.497469246 : f32
    %112 = vector.broadcast %cst_52 : f32 to vector<24x256xf32>
    %113 = arith.addf %111, %112 : vector<24x256xf32>
    %114 = arith.mulf %113, %83 : vector<24x256xf32>
    %cst_53 = arith.constant 1.000000e+00 : f32
    %115 = vector.broadcast %cst_53 : f32 to vector<24x256xf32>
    %116 = arith.addf %114, %115 : vector<24x256xf32>
    %117 = arith.divf %97, %116 : vector<24x256xf32>
    %cst_54 = arith.constant 1.000000e+00 : f32
    %118 = vector.broadcast %cst_54 : f32 to vector<24x256xf32>
    %119 = arith.addf %118, %117 : vector<24x256xf32>
    %120 = arith.mulf %76, %119 : vector<24x256xf32>
    %c0_55 = arith.constant 0 : index
    %c0_56 = arith.constant 0 : index
    %c0_57 = arith.constant 0 : index
    %121 = vector.load %arg12[%c0_55, %c0_56, %c0_57] : memref<1x256x64xf32, #tpu.memory_space<vmem>>, vector<1x256x64xf32>
    %122 = vector.shape_cast %121 : vector<1x256x64xf32> to vector<256x64xf32>
    %cst_58 = arith.constant dense<0.000000e+00> : vector<24x64xf32>
    %123 = tpu.matmul %120, %122, %cst_58 {dimension_numbers = #tpu.dot_dimension_numbers<[1], [0], [0], [1], [0, 0, 1, 1], [], []>} : vector<24x256xf32>, vector<256x64xf32>, vector<24x64xf32> -> vector<24x64xf32>
    %c0_59 = arith.constant 0 : index
    %c0_60 = arith.constant 0 : index
    %c0_61 = arith.constant 0 : index
    %124 = vector.load %arg13[%c0_59, %c0_60, %c0_61] : memref<1x1x64xf32, #tpu.memory_space<vmem>>, vector<1x1x64xf32>
    %125 = vector.shape_cast %124 : vector<1x1x64xf32> to vector<1x64xf32>
    %126 = vector.broadcast %125 : vector<1x64xf32> to vector<24x64xf32>
    %127 = arith.addf %123, %126 : vector<24x64xf32>
    %128 = arith.addf %127, %45 : vector<24x64xf32>
    %c0_62 = arith.constant 0 : index
    %c0_63 = arith.constant 0 : index
    %129 = vector.load %arg21[%c0_62, %c0_63] : memref<24x64xf32, #tpu.memory_space<vmem>>, vector<24x64xf32>
    tpu.vector_store %arg21[%c0_62, %c0_63], %128 {strides = array<i32>} : memref<24x64xf32, #tpu.memory_space<vmem>>, vector<24x64xf32>,
    %c1_i32 = arith.constant 1 : i32
    %130 = arith.cmpi eq, %arg0, %c1_i32 : i32
    %131 = arith.extui %130 : i1 to i32
    %c0_i32_64 = arith.constant 0 : i32
    %132 = arith.cmpi ne, %131, %c0_i32_64 : i32
    scf.if %132 {
      %c0_65 = arith.constant 0 : index
      %c0_66 = arith.constant 0 : index
      %133 = vector.load %arg21[%c0_65, %c0_66] : memref<24x64xf32, #tpu.memory_space<vmem>>, vector<24x64xf32>
      %c0_67 = arith.constant 0 : index
      %c0_68 = arith.constant 0 : index
      %134 = vector.load %arg14[%c0_67, %c0_68] : memref<1x64xf32, #tpu.memory_space<vmem>>, vector<1x64xf32>
      %c0_69 = arith.constant 0 : index
      %c0_70 = arith.constant 0 : index
      %135 = vector.load %arg15[%c0_69, %c0_70] : memref<1x64xf32, #tpu.memory_space<vmem>>, vector<1x64xf32>
      %cst_71 = arith.constant dense<0.000000e+00> : vector<24xf32>
      %136 = vector.multi_reduction <add>, %133, %cst_71 [1] : vector<24x64xf32> to vector<24xf32>
      %137 = vector.shape_cast %136 : vector<24xf32> to vector<24x1xf32>
      %cst_72 = arith.constant 6.400000e+01 : f32
      %138 = vector.broadcast %cst_72 : f32 to vector<24x1xf32>
      %139 = arith.divf %137, %138 : vector<24x1xf32>
      %140 = vector.broadcast %139 : vector<24x1xf32> to vector<24x64xf32>
      %141 = arith.subf %133, %140 : vector<24x64xf32>
      %142 = arith.mulf %141, %141 : vector<24x64xf32>
      %cst_73 = arith.constant dense<0.000000e+00> : vector<24xf32>
      %143 = vector.multi_reduction <add>, %142, %cst_73 [1] : vector<24x64xf32> to vector<24xf32>
      %144 = vector.shape_cast %143 : vector<24xf32> to vector<24x1xf32>
      %cst_74 = arith.constant 6.400000e+01 : f32
      %145 = vector.broadcast %cst_74 : f32 to vector<24x1xf32>
      %146 = arith.divf %144, %145 : vector<24x1xf32>
      %147 = vector.broadcast %139 : vector<24x1xf32> to vector<24x64xf32>
      %148 = arith.subf %133, %147 : vector<24x64xf32>
      %cst_75 = arith.constant 9.99999974E-6 : f32
      %149 = vector.broadcast %cst_75 : f32 to vector<24x1xf32>
      %150 = arith.addf %146, %149 : vector<24x1xf32>
      %151 = math.rsqrt %150 : vector<24x1xf32>
      %152 = vector.broadcast %151 : vector<24x1xf32> to vector<24x64xf32>
      %153 = arith.mulf %148, %152 : vector<24x64xf32>
      %154 = vector.broadcast %134 : vector<1x64xf32> to vector<24x64xf32>
      %155 = arith.mulf %153, %154 : vector<24x64xf32>
      %156 = vector.broadcast %135 : vector<1x64xf32> to vector<24x64xf32>
      %157 = arith.addf %155, %156 : vector<24x64xf32>
      %c0_76 = arith.constant 0 : index
      %c0_77 = arith.constant 0 : index
      %158 = vector.load %arg16[%c0_76, %c0_77] : memref<64x64xf32, #tpu.memory_space<vmem>>, vector<64x64xf32>
      %cst_78 = arith.constant dense<0.000000e+00> : vector<24x64xf32>
      %159 = tpu.matmul %157, %158, %cst_78 {dimension_numbers = #tpu.dot_dimension_numbers<[1], [0], [0], [1], [0, 0, 1, 1], [], []>} : vector<24x64xf32>, vector<64x64xf32>, vector<24x64xf32> -> vector<24x64xf32>
      %c0_79 = arith.constant 0 : index
      %c0_80 = arith.constant 0 : index
      %160 = vector.load %arg17[%c0_79, %c0_80] : memref<1x64xf32, #tpu.memory_space<vmem>>, vector<1x64xf32>
      %161 = vector.broadcast %160 : vector<1x64xf32> to vector<24x64xf32>
      %162 = arith.addf %159, %161 : vector<24x64xf32>
      %c0_81 = arith.constant 0 : index
      %c0_82 = arith.constant 0 : index
      %163 = vector.load %arg18[%c0_81, %c0_82] : memref<64x128xf32, #tpu.memory_space<vmem>>, vector<64x128xf32>
      %cst_83 = arith.constant dense<0.000000e+00> : vector<24x128xf32>
      %164 = tpu.matmul %162, %163, %cst_83 {dimension_numbers = #tpu.dot_dimension_numbers<[1], [0], [0], [1], [0, 0, 1, 1], [], []>} : vector<24x64xf32>, vector<64x128xf32>, vector<24x128xf32> -> vector<24x128xf32>
      %c0_84 = arith.constant 0 : index
      %c0_85 = arith.constant 0 : index
      %165 = vector.load %arg19[%c0_84, %c0_85] : memref<1x128xf32, #tpu.memory_space<vmem>>, vector<1x128xf32>
      %166 = vector.broadcast %165 : vector<1x128xf32> to vector<24x128xf32>
      %167 = arith.addf %164, %166 : vector<24x128xf32>
      %c0_86 = arith.constant 0 : index
      %c0_87 = arith.constant 0 : index
      %168 = vector.load %arg20[%c0_86, %c0_87] : memref<24x128xf32, #tpu.memory_space<vmem>>, vector<24x128xf32>
      tpu.vector_store %arg20[%c0_86, %c0_87], %167 {strides = array<i32>} : memref<24x128xf32, #tpu.memory_space<vmem>>, vector<24x128xf32>,
    } else {
    }
    return
  }
  func.func @transform_0(%arg0: i32) -> (i32, i32) {
    %c0_i32 = arith.constant 0 : i32
    %c0_i32_0 = arith.constant 0 : i32
    %c0_i32_1 = arith.constant 0 : i32
    return %c0_i32, %c0_i32_0 : i32, i32
  }
  func.func @transform_1(%arg0: i32) -> (i32, i32) {
    %c0_i32 = arith.constant 0 : i32
    %c0_i32_0 = arith.constant 0 : i32
    %c0_i32_1 = arith.constant 0 : i32
    return %c0_i32, %c0_i32_0 : i32, i32
  }
  func.func @transform_2(%arg0: i32) -> (i32, i32) {
    %c0_i32 = arith.constant 0 : i32
    %c0_i32_0 = arith.constant 0 : i32
    %c0_i32_1 = arith.constant 0 : i32
    return %c0_i32, %c0_i32_0 : i32, i32
  }
  func.func @transform_3(%arg0: i32) -> (i32, i32, i32) {
    %c0_i32 = arith.constant 0 : i32
    %c0_i32_0 = arith.constant 0 : i32
    %c0_i32_1 = arith.constant 0 : i32
    return %arg0, %c0_i32, %c0_i32_0 : i32, i32, i32
  }
  func.func @transform_4(%arg0: i32) -> (i32, i32, i32) {
    %c0_i32 = arith.constant 0 : i32
    %c0_i32_0 = arith.constant 0 : i32
    %c0_i32_1 = arith.constant 0 : i32
    return %arg0, %c0_i32, %c0_i32_0 : i32, i32, i32
  }
  func.func @transform_5(%arg0: i32) -> (i32, i32, i32) {
    %c0_i32 = arith.constant 0 : i32
    %c0_i32_0 = arith.constant 0 : i32
    %c0_i32_1 = arith.constant 0 : i32
    return %arg0, %c0_i32, %c0_i32_0 : i32, i32, i32
  }
  func.func @transform_6(%arg0: i32) -> (i32, i32, i32) {
    %c0_i32 = arith.constant 0 : i32
    %c0_i32_0 = arith.constant 0 : i32
    %c0_i32_1 = arith.constant 0 : i32
    return %arg0, %c0_i32, %c0_i32_0 : i32, i32, i32
  }
  func.func @transform_7(%arg0: i32) -> (i32, i32, i32) {
    %c0_i32 = arith.constant 0 : i32
    %c0_i32_0 = arith.constant 0 : i32
    %c0_i32_1 = arith.constant 0 : i32
    return %arg0, %c0_i32, %c0_i32_0 : i32, i32, i32
  }
  func.func @transform_8(%arg0: i32) -> (i32, i32, i32) {
    %c0_i32 = arith.constant 0 : i32
    %c0_i32_0 = arith.constant 0 : i32
    %c0_i32_1 = arith.constant 0 : i32
    return %arg0, %c0_i32, %c0_i32_0 : i32, i32, i32
  }
  func.func @transform_9(%arg0: i32) -> (i32, i32, i32) {
    %c0_i32 = arith.constant 0 : i32
    %c0_i32_0 = arith.constant 0 : i32
    %c0_i32_1 = arith.constant 0 : i32
    return %arg0, %c0_i32, %c0_i32_0 : i32, i32, i32
  }
  func.func @transform_10(%arg0: i32) -> (i32, i32, i32) {
    %c0_i32 = arith.constant 0 : i32
    %c0_i32_0 = arith.constant 0 : i32
    %c0_i32_1 = arith.constant 0 : i32
    return %arg0, %c0_i32, %c0_i32_0 : i32, i32, i32
  }
  func.func @transform_11(%arg0: i32) -> (i32, i32, i32) {
    %c0_i32 = arith.constant 0 : i32
    %c0_i32_0 = arith.constant 0 : i32
    %c0_i32_1 = arith.constant 0 : i32
    return %arg0, %c0_i32, %c0_i32_0 : i32, i32, i32
  }
  func.func @transform_12(%arg0: i32) -> (i32, i32, i32) {
    %c0_i32 = arith.constant 0 : i32
    %c0_i32_0 = arith.constant 0 : i32
    %c0_i32_1 = arith.constant 0 : i32
    return %arg0, %c0_i32, %c0_i32_0 : i32, i32, i32
  }
  func.func @transform_13(%arg0: i32) -> (i32, i32) {
    %c0_i32 = arith.constant 0 : i32
    %c0_i32_0 = arith.constant 0 : i32
    %c0_i32_1 = arith.constant 0 : i32
    return %c0_i32, %c0_i32_0 : i32, i32
  }
  func.func @transform_14(%arg0: i32) -> (i32, i32) {
    %c0_i32 = arith.constant 0 : i32
    %c0_i32_0 = arith.constant 0 : i32
    %c0_i32_1 = arith.constant 0 : i32
    return %c0_i32, %c0_i32_0 : i32, i32
  }
  func.func @transform_15(%arg0: i32) -> (i32, i32) {
    %c0_i32 = arith.constant 0 : i32
    %c0_i32_0 = arith.constant 0 : i32
    %c0_i32_1 = arith.constant 0 : i32
    return %c0_i32, %c0_i32_0 : i32, i32
  }
  func.func @transform_16(%arg0: i32) -> (i32, i32) {
    %c0_i32 = arith.constant 0 : i32
    %c0_i32_0 = arith.constant 0 : i32
    %c0_i32_1 = arith.constant 0 : i32
    return %c0_i32, %c0_i32_0 : i32, i32
  }
  func.func @transform_17(%arg0: i32) -> (i32, i32) {
    %c0_i32 = arith.constant 0 : i32
    %c0_i32_0 = arith.constant 0 : i32
    %c0_i32_1 = arith.constant 0 : i32
    return %c0_i32, %c0_i32_0 : i32, i32
  }
  func.func @transform_18(%arg0: i32) -> (i32, i32) {
    %c0_i32 = arith.constant 0 : i32
    %c0_i32_0 = arith.constant 0 : i32
    %c0_i32_1 = arith.constant 0 : i32
    return %c0_i32, %c0_i32_0 : i32, i32
  }
  func.func @transform_19(%arg0: i32) -> (i32, i32) {
    %c0_i32 = arith.constant 0 : i32
    %c0_i32_0 = arith.constant 0 : i32
    %c0_i32_1 = arith.constant 0 : i32
    return %c0_i32, %c0_i32_0 : i32, i32
  }
}

</mosaic_0001>

<llo_original>
// kernel: vit_forward.1
$region0: #{vit_forward.1}
  #allocation0 [shape = 'u32[]', space=smem, size = 0x4, offset = 0x4, fixed_abs, tag = 'smem constant byte address 0x4 - core index']
  #allocation1 [shape = 'u32[144,128]{1,0:T(1,128)}', space=vmem, size = 0x12000, scoped, tag = 'internal scratch']
  #allocation2 [shape = 'f32[24,64]{1,0:T(8,128)}', space=vmem, size = 0x3000, scoped, tag = 'scratch operand']
  %s0 = inlined_call_operand.vmem [shape: f32[24,192], index: 0, kind: input, shape index: {}]
  %s1 = inlined_call_operand.vmem [shape: f32[192,64], index: 1, kind: input, shape index: {}]
  %s2 = inlined_call_operand.vmem [shape: f32[24,64], index: 2, kind: input, shape index: {}]
  %s3 = inlined_call_operand.vmem [shape: f32[2,1,64], index: 3, kind: input, shape index: {}]
  %s4 = inlined_call_operand.vmem [shape: f32[2,1,64], index: 4, kind: input, shape index: {}]
  %s5 = inlined_call_operand.vmem [shape: f32[2,64,192], index: 5, kind: input, shape index: {}]
  %s6 = inlined_call_operand.vmem [shape: f32[2,1,192], index: 6, kind: input, shape index: {}]
  %s7 = inlined_call_operand.vmem [shape: f32[2,64,64], index: 7, kind: input, shape index: {}]
  %s8 = inlined_call_operand.vmem [shape: f32[2,1,64], index: 8, kind: input, shape index: {}]
  %s9 = inlined_call_operand.vmem [shape: f32[2,64,256], index: 9, kind: input, shape index: {}]
  %s10 = inlined_call_operand.vmem [shape: f32[2,1,256], index: 10, kind: input, shape index: {}]
  %s11 = inlined_call_operand.vmem [shape: f32[2,256,64], index: 11, kind: input, shape index: {}]
  %s12 = inlined_call_operand.vmem [shape: f32[2,1,64], index: 12, kind: input, shape index: {}]
  %s13 = inlined_call_operand.vmem [shape: f32[1,64], index: 13, kind: input, shape index: {}]
  %s14 = inlined_call_operand.vmem [shape: f32[1,64], index: 14, kind: input, shape index: {}]
  %s15 = inlined_call_operand.vmem [shape: f32[64,64], index: 15, kind: input, shape index: {}]
  %s16 = inlined_call_operand.vmem [shape: f32[1,64], index: 16, kind: input, shape index: {}]
  %s17 = inlined_call_operand.vmem [shape: f32[64,128], index: 17, kind: input, shape index: {}]
  %s18 = inlined_call_operand.vmem [shape: f32[1,128], index: 18, kind: input, shape index: {}]
  %s19 = inlined_call_operand.vmem [shape: f32[24,128], index: 19, kind: output, shape index: {}]
  %s20 = sld [smem:[#allocation0]]
  $region117: #{vit_forward.1} parent=0
    _
  %s22 = ssub.s32 1, %s20
  %s23 = scalar_select 0, %s22, %s20
  loop: start=0, step=1, limit=4
  $region2: #{vit_forward.1} parent=0 // loop_pre_header
    _
  $region3: #{vit_forward.1} parent=0 // loop_header
    %s25 = sphi 0, %s29
    %p26 = scmp.ge.s32.totalorder %s25, 4
    %s33 = sphi 0, %s33
    %s35 = sphi 0, %s33
    %s36 = sphi 0, %s35
    %s50 = sphi 0, %s36
    %s54 = sphi 0, %s54
    %s56 = sphi 0, %s54
    %s57 = sphi 0, %s56
    %s71 = sphi 0, %s57
    %s75 = sphi 0, %s75
    %s77 = sphi 0, %s75
    %s78 = sphi 0, %s77
    %s92 = sphi 0, %s78
    %s98 = sphi 0, %s100
    %s101 = sphi 0, %s98
    %s102 = sphi 0, %s101
    %s118 = sphi 0, %s102
    %s124 = sphi 0, %s126
    %s127 = sphi 0, %s124
    %s128 = sphi 0, %s127
    %s144 = sphi 0, %s128
    %s150 = sphi 0, %s152
    %s153 = sphi 0, %s150
    %s154 = sphi 0, %s153
    %s170 = sphi 0, %s154
    %s176 = sphi 0, %s178
    %s179 = sphi 0, %s176
    %s180 = sphi 0, %s179
    %s196 = sphi 0, %s180
    %s202 = sphi 0, %s204
    %s205 = sphi 0, %s202
    %s206 = sphi 0, %s205
    %s222 = sphi 0, %s206
    %s228 = sphi 0, %s230
    %s231 = sphi 0, %s228
    %s232 = sphi 0, %s231
    %s248 = sphi 0, %s232
    %s254 = sphi 0, %s256
    %s257 = sphi 0, %s254
    %s258 = sphi 0, %s257
    %s274 = sphi 0, %s258
    %s280 = sphi 0, %s282
    %s283 = sphi 0, %s280
    %s284 = sphi 0, %s283
    %s300 = sphi 0, %s284
    %s306 = sphi 0, %s308
    %s309 = sphi 0, %s306
    %s310 = sphi 0, %s309
    %s326 = sphi 0, %s310
    %s332 = sphi 0, %s334
    %s335 = sphi 0, %s332
    %s336 = sphi 0, %s335
    %s352 = sphi 0, %s336
    %s356 = sphi 0, %s356
    %s358 = sphi 0, %s356
    %s359 = sphi 0, %s358
    %s373 = sphi 0, %s359
    %s377 = sphi 0, %s377
    %s379 = sphi 0, %s377
    %s380 = sphi 0, %s379
    %s394 = sphi 0, %s380
    %s398 = sphi 0, %s398
    %s400 = sphi 0, %s398
    %s401 = sphi 0, %s400
    %s415 = sphi 0, %s401
    %s419 = sphi 0, %s419
    %s421 = sphi 0, %s419
    %s422 = sphi 0, %s421
    %s436 = sphi 0, %s422
    %s440 = sphi 0, %s440
    %s442 = sphi 0, %s440
    %s443 = sphi 0, %s442
    %s457 = sphi 0, %s443
    %s461 = sphi 0, %s461
    %s463 = sphi 0, %s461
    %s464 = sphi 0, %s463
    %s478 = sphi 0, %s464
    %s482 = sphi 0, %s482
    %s484 = sphi 0, %s482
    %s485 = sphi 0, %s484
    %s499 = sphi 0, %s485
  $region4: #{vit_forward.1} parent=0 // loop_header_branch
    %28 = sbr.rel (%p26) target = $region8
  $region5: #{vit_forward.1} parent=0 // loop_body
    %s30 = ssub.s32 %s25, 1
    %s31 = ssub.s32 %s25, 2
    %s32 = sadd.s32 %s25, 1
    %s34 = sadd.s32 %s33, 1
    %p37 = scmp.eq.s32.totalorder %s25, 1
    %p38 = scmp.ne.s32.totalorder %s33, %s35
    %p39 = scmp.eq.s32.totalorder %s25, 0
    %p40 = por %p38, %p39
    %p41 = scmp.ne.s32.totalorder %s33, %s35
    %p42 = scmp.eq.s32.totalorder %s30, 1
    %p43 = por %p41, %p42
    %p44 = scmp.ne.s32.totalorder %s35, %s36
    %p45 = scmp.eq.s32.totalorder %s30, 0
    %p46 = por %p44, %p45
    %p47 = scmp.ne.s32.totalorder %s35, %s36
    %p48 = scmp.eq.s32.totalorder %s31, 1
    %p49 = por %p47, %p48
    %p51 = scmp.ne.s32.totalorder %s36, %s50
    %p52 = scmp.eq.s32.totalorder %s31, 0
    %p53 = por %p51, %p52
    %s55 = sadd.s32 %s54, 1
    %p58 = scmp.eq.s32.totalorder %s25, 1
    %p59 = scmp.ne.s32.totalorder %s54, %s56
    %p60 = scmp.eq.s32.totalorder %s25, 0
    %p61 = por %p59, %p60
    %p62 = scmp.ne.s32.totalorder %s54, %s56
    %p63 = scmp.eq.s32.totalorder %s30, 1
    %p64 = por %p62, %p63
    %p65 = scmp.ne.s32.totalorder %s56, %s57
    %p66 = scmp.eq.s32.totalorder %s30, 0
    %p67 = por %p65, %p66
    %p68 = scmp.ne.s32.totalorder %s56, %s57
    %p69 = scmp.eq.s32.totalorder %s31, 1
    %p70 = por %p68, %p69
    %p72 = scmp.ne.s32.totalorder %s57, %s71
    %p73 = scmp.eq.s32.totalorder %s31, 0
    %p74 = por %p72, %p73
    %s76 = sadd.s32 %s75, 1
    %p79 = scmp.eq.s32.totalorder %s25, 1
    %p80 = scmp.ne.s32.totalorder %s75, %s77
    %p81 = scmp.eq.s32.totalorder %s25, 0
    %p82 = por %p80, %p81
    %p83 = scmp.ne.s32.totalorder %s75, %s77
    %p84 = scmp.eq.s32.totalorder %s30, 1
    %p85 = por %p83, %p84
    %p86 = scmp.ne.s32.totalorder %s77, %s78
    %p87 = scmp.eq.s32.totalorder %s30, 0
    %p88 = por %p86, %p87
    %p89 = scmp.ne.s32.totalorder %s77, %s78
    %p90 = scmp.eq.s32.totalorder %s31, 1
    %p91 = por %p89, %p90
    %p93 = scmp.ne.s32.totalorder %s78, %s92
    %p94 = scmp.eq.s32.totalorder %s31, 0
    %p95 = por %p93, %p94
    %s96 = ssub.s32 %s25, %s32
    %p97 = scmp.eq.s32.totalorder %s96, 0
    %s99 = sadd.s32 %s98, 1
    %s100 = scalar_select %p97, %s98, %s99
    %p103 = pneg %p97
    %p104 = scmp.eq.s32.totalorder %s25, 1
    %p105 = por %p103, %p104
    %p106 = scmp.ne.s32.totalorder %s98, %s101
    %p107 = scmp.eq.s32.totalorder %s25, 0
    %p108 = por %p106, %p107
    %p109 = scmp.ne.s32.totalorder %s98, %s101
    %p110 = scmp.eq.s32.totalorder %s30, 1
    %p111 = por %p109, %p110
    %p112 = scmp.ne.s32.totalorder %s101, %s102
    %p113 = scmp.eq.s32.totalorder %s30, 0
    %p114 = por %p112, %p113
    %p115 = scmp.ne.s32.totalorder %s101, %s102
    %p116 = scmp.eq.s32.totalorder %s31, 1
    %p117 = por %p115, %p116
    %p119 = scmp.ne.s32.totalorder %s102, %s118
    %p120 = scmp.eq.s32.totalorder %s31, 0
    %p121 = por %p119, %p120
    %s122 = ssub.s32 %s25, %s32
    %p123 = scmp.eq.s32.totalorder %s122, 0
    %s125 = sadd.s32 %s124, 1
    %s126 = scalar_select %p123, %s124, %s125
    %p129 = pneg %p123
    %p130 = scmp.eq.s32.totalorder %s25, 1
    %p131 = por %p129, %p130
    %p132 = scmp.ne.s32.totalorder %s124, %s127
    %p133 = scmp.eq.s32.totalorder %s25, 0
    %p134 = por %p132, %p133
    %p135 = scmp.ne.s32.totalorder %s124, %s127
    %p136 = scmp.eq.s32.totalorder %s30, 1
    %p137 = por %p135, %p136
    %p138 = scmp.ne.s32.totalorder %s127, %s128
    %p139 = scmp.eq.s32.totalorder %s30, 0
    %p140 = por %p138, %p139
    %p141 = scmp.ne.s32.totalorder %s127, %s128
    %p142 = scmp.eq.s32.totalorder %s31, 1
    %p143 = por %p141, %p142
    %p145 = scmp.ne.s32.totalorder %s128, %s144
    %p146 = scmp.eq.s32.totalorder %s31, 0
    %p147 = por %p145, %p146
    %s148 = ssub.s32 %s25, %s32
    %p149 = scmp.eq.s32.totalorder %s148, 0
    %s151 = sadd.s32 %s150, 1
    %s152 = scalar_select %p149, %s150, %s151
    %p155 = pneg %p149
    %p156 = scmp.eq.s32.totalorder %s25, 1
    %p157 = por %p155, %p156
    %p158 = scmp.ne.s32.totalorder %s150, %s153
    %p159 = scmp.eq.s32.totalorder %s25, 0
    %p160 = por %p158, %p159
    %p161 = scmp.ne.s32.totalorder %s150, %s153
    %p162 = scmp.eq.s32.totalorder %s30, 1
    %p163 = por %p161, %p162
    %p164 = scmp.ne.s32.totalorder %s153, %s154
    %p165 = scmp.eq.s32.totalorder %s30, 0
    %p166 = por %p164, %p165
    %p167 = scmp.ne.s32.totalorder %s153, %s154
    %p168 = scmp.eq.s32.totalorder %s31, 1
    %p169 = por %p167, %p168
    %p171 = scmp.ne.s32.totalorder %s154, %s170
    %p172 = scmp.eq.s32.totalorder %s31, 0
    %p173 = por %p171, %p172
    %s174 = ssub.s32 %s25, %s32
    %p175 = scmp.eq.s32.totalorder %s174, 0
    %s177 = sadd.s32 %s176, 1
    %s178 = scalar_select %p175, %s176, %s177
    %p181 = pneg %p175
    %p182 = scmp.eq.s32.totalorder %s25, 1
    %p183 = por %p181, %p182
    %p184 = scmp.ne.s32.totalorder %s176, %s179
    %p185 = scmp.eq.s32.totalorder %s25, 0
    %p186 = por %p184, %p185
    %p187 = scmp.ne.s32.totalorder %s176, %s179
    %p188 = scmp.eq.s32.totalorder %s30, 1
    %p189 = por %p187, %p188
    %p190 = scmp.ne.s32.totalorder %s179, %s180
    %p191 = scmp.eq.s32.totalorder %s30, 0
    %p192 = por %p190, %p191
    %p193 = scmp.ne.s32.totalorder %s179, %s180
    %p194 = scmp.eq.s32.totalorder %s31, 1
    %p195 = por %p193, %p194
    %p197 = scmp.ne.s32.totalorder %s180, %s196
    %p198 = scmp.eq.s32.totalorder %s31, 0
    %p199 = por %p197, %p198
    %s200 = ssub.s32 %s25, %s32
    %p201 = scmp.eq.s32.totalorder %s200, 0
    %s203 = sadd.s32 %s202, 1
    %s204 = scalar_select %p201, %s202, %s203
    %p207 = pneg %p201
    %p208 = scmp.eq.s32.totalorder %s25, 1
    %p209 = por %p207, %p208
    %p210 = scmp.ne.s32.totalorder %s202, %s205
    %p211 = scmp.eq.s32.totalorder %s25, 0
    %p212 = por %p210, %p211
    %p213 = scmp.ne.s32.totalorder %s202, %s205
    %p214 = scmp.eq.s32.totalorder %s30, 1
    %p215 = por %p213, %p214
    %p216 = scmp.ne.s32.totalorder %s205, %s206
    %p217 = scmp.eq.s32.totalorder %s30, 0
    %p218 = por %p216, %p217
    %p219 = scmp.ne.s32.totalorder %s205, %s206
    %p220 = scmp.eq.s32.totalorder %s31, 1
    %p221 = por %p219, %p220
    %p223 = scmp.ne.s32.totalorder %s206, %s222
    %p224 = scmp.eq.s32.totalorder %s31, 0
    %p225 = por %p223, %p224
    %s226 = ssub.s32 %s25, %s32
    %p227 = scmp.eq.s32.totalorder %s226, 0
    %s229 = sadd.s32 %s228, 1
    %s230 = scalar_select %p227, %s228, %s229
    %p233 = pneg %p227
    %p234 = scmp.eq.s32.totalorder %s25, 1
    %p235 = por %p233, %p234
    %p236 = scmp.ne.s32.totalorder %s228, %s231
    %p237 = scmp.eq.s32.totalorder %s25, 0
    %p238 = por %p236, %p237
    %p239 = scmp.ne.s32.totalorder %s228, %s231
    %p240 = scmp.eq.s32.totalorder %s30, 1
    %p241 = por %p239, %p240
    %p242 = scmp.ne.s32.totalorder %s231, %s232
    %p243 = scmp.eq.s32.totalorder %s30, 0
    %p244 = por %p242, %p243
    %p245 = scmp.ne.s32.totalorder %s231, %s232
    %p246 = scmp.eq.s32.totalorder %s31, 1
    %p247 = por %p245, %p246
    %p249 = scmp.ne.s32.totalorder %s232, %s248
    %p250 = scmp.eq.s32.totalorder %s31, 0
    %p251 = por %p249, %p250
    %s252 = ssub.s32 %s25, %s32
    %p253 = scmp.eq.s32.totalorder %s252, 0
    %s255 = sadd.s32 %s254, 1
    %s256 = scalar_select %p253, %s254, %s255
    %p259 = pneg %p253
    %p260 = scmp.eq.s32.totalorder %s25, 1
    %p261 = por %p259, %p260
    %p262 = scmp.ne.s32.totalorder %s254, %s257
    %p263 = scmp.eq.s32.totalorder %s25, 0
    %p264 = por %p262, %p263
    %p265 = scmp.ne.s32.totalorder %s254, %s257
    %p266 = scmp.eq.s32.totalorder %s30, 1
    %p267 = por %p265, %p266
    %p268 = scmp.ne.s32.totalorder %s257, %s258
    %p269 = scmp.eq.s32.totalorder %s30, 0
    %p270 = por %p268, %p269
    %p271 = scmp.ne.s32.totalorder %s257, %s258
    %p272 = scmp.eq.s32.totalorder %s31, 1
    %p273 = por %p271, %p272
    %p275 = scmp.ne.s32.totalorder %s258, %s274
    %p276 = scmp.eq.s32.totalorder %s31, 0
    %p277 = por %p275, %p276
    %s278 = ssub.s32 %s25, %s32
    %p279 = scmp.eq.s32.totalorder %s278, 0
    %s281 = sadd.s32 %s280, 1
    %s282 = scalar_select %p279, %s280, %s281
    %p285 = pneg %p279
    %p286 = scmp.eq.s32.totalorder %s25, 1
    %p287 = por %p285, %p286
    %p288 = scmp.ne.s32.totalorder %s280, %s283
    %p289 = scmp.eq.s32.totalorder %s25, 0
    %p290 = por %p288, %p289
    %p291 = scmp.ne.s32.totalorder %s280, %s283
    %p292 = scmp.eq.s32.totalorder %s30, 1
    %p293 = por %p291, %p292
    %p294 = scmp.ne.s32.totalorder %s283, %s284
    %p295 = scmp.eq.s32.totalorder %s30, 0
    %p296 = por %p294, %p295
    %p297 = scmp.ne.s32.totalorder %s283, %s284
    %p298 = scmp.eq.s32.totalorder %s31, 1
    %p299 = por %p297, %p298
    %p301 = scmp.ne.s32.totalorder %s284, %s300
    %p302 = scmp.eq.s32.totalorder %s31, 0
    %p303 = por %p301, %p302
    %s304 = ssub.s32 %s25, %s32
    %p305 = scmp.eq.s32.totalorder %s304, 0
    %s307 = sadd.s32 %s306, 1
    %s308 = scalar_select %p305, %s306, %s307
    %p311 = pneg %p305
    %p312 = scmp.eq.s32.totalorder %s25, 1
    %p313 = por %p311, %p312
    %p314 = scmp.ne.s32.totalorder %s306, %s309
    %p315 = scmp.eq.s32.totalorder %s25, 0
    %p316 = por %p314, %p315
    %p317 = scmp.ne.s32.totalorder %s306, %s309
    %p318 = scmp.eq.s32.totalorder %s30, 1
    %p319 = por %p317, %p318
    %p320 = scmp.ne.s32.totalorder %s309, %s310
    %p321 = scmp.eq.s32.totalorder %s30, 0
    %p322 = por %p320, %p321
    %p323 = scmp.ne.s32.totalorder %s309, %s310
    %p324 = scmp.eq.s32.totalorder %s31, 1
    %p325 = por %p323, %p324
    %p327 = scmp.ne.s32.totalorder %s310, %s326
    %p328 = scmp.eq.s32.totalorder %s31, 0
    %p329 = por %p327, %p328
    %s330 = ssub.s32 %s25, %s32
    %p331 = scmp.eq.s32.totalorder %s330, 0
    %s333 = sadd.s32 %s332, 1
    %s334 = scalar_select %p331, %s332, %s333
    %p337 = pneg %p331
    %p338 = scmp.eq.s32.totalorder %s25, 1
    %p339 = por %p337, %p338
    %p340 = scmp.ne.s32.totalorder %s332, %s335
    %p341 = scmp.eq.s32.totalorder %s25, 0
    %p342 = por %p340, %p341
    %p343 = scmp.ne.s32.totalorder %s332, %s335
    %p344 = scmp.eq.s32.totalorder %s30, 1
    %p345 = por %p343, %p344
    %p346 = scmp.ne.s32.totalorder %s335, %s336
    %p347 = scmp.eq.s32.totalorder %s30, 0
    %p348 = por %p346, %p347
    %p349 = scmp.ne.s32.totalorder %s335, %s336
    %p350 = scmp.eq.s32.totalorder %s31, 1
    %p351 = por %p349, %p350
    %p353 = scmp.ne.s32.totalorder %s336, %s352
    %p354 = scmp.eq.s32.totalorder %s31, 0
    %p355 = por %p353, %p354
    %s357 = sadd.s32 %s356, 1
    %p360 = scmp.eq.s32.totalorder %s25, 1
    %p361 = scmp.ne.s32.totalorder %s356, %s358
    %p362 = scmp.eq.s32.totalorder %s25, 0
    %p363 = por %p361, %p362
    %p364 = scmp.ne.s32.totalorder %s356, %s358
    %p365 = scmp.eq.s32.totalorder %s30, 1
    %p366 = por %p364, %p365
    %p367 = scmp.ne.s32.totalorder %s358, %s359
    %p368 = scmp.eq.s32.totalorder %s30, 0
    %p369 = por %p367, %p368
    %p370 = scmp.ne.s32.totalorder %s358, %s359
    %p371 = scmp.eq.s32.totalorder %s31, 1
    %p372 = por %p370, %p371
    %p374 = scmp.ne.s32.totalorder %s359, %s373
    %p375 = scmp.eq.s32.totalorder %s31, 0
    %p376 = por %p374, %p375
    %s378 = sadd.s32 %s377, 1
    %p381 = scmp.eq.s32.totalorder %s25, 1
    %p382 = scmp.ne.s32.totalorder %s377, %s379
    %p383 = scmp.eq.s32.totalorder %s25, 0
    %p384 = por %p382, %p383
    %p385 = scmp.ne.s32.totalorder %s377, %s379
    %p386 = scmp.eq.s32.totalorder %s30, 1
    %p387 = por %p385, %p386
    %p388 = scmp.ne.s32.totalorder %s379, %s380
    %p389 = scmp.eq.s32.totalorder %s30, 0
    %p390 = por %p388, %p389
    %p391 = scmp.ne.s32.totalorder %s379, %s380
    %p392 = scmp.eq.s32.totalorder %s31, 1
    %p393 = por %p391, %p392
    %p395 = scmp.ne.s32.totalorder %s380, %s394
    %p396 = scmp.eq.s32.totalorder %s31, 0
    %p397 = por %p395, %p396
    %s399 = sadd.s32 %s398, 1
    %p402 = scmp.eq.s32.totalorder %s25, 1
    %p403 = scmp.ne.s32.totalorder %s398, %s400
    %p404 = scmp.eq.s32.totalorder %s25, 0
    %p405 = por %p403, %p404
    %p406 = scmp.ne.s32.totalorder %s398, %s400
    %p407 = scmp.eq.s32.totalorder %s30, 1
    %p408 = por %p406, %p407
    %p409 = scmp.ne.s32.totalorder %s400, %s401
    %p410 = scmp.eq.s32.totalorder %s30, 0
    %p411 = por %p409, %p410
    %p412 = scmp.ne.s32.totalorder %s400, %s401
    %p413 = scmp.eq.s32.totalorder %s31, 1
    %p414 = por %p412, %p413
    %p416 = scmp.ne.s32.totalorder %s401, %s415
    %p417 = scmp.eq.s32.totalorder %s31, 0
    %p418 = por %p416, %p417
    %s420 = sadd.s32 %s419, 1
    %p423 = scmp.eq.s32.totalorder %s25, 1
    %p424 = scmp.ne.s32.totalorder %s419, %s421
    %p425 = scmp.eq.s32.totalorder %s25, 0
    %p426 = por %p424, %p425
    %p427 = scmp.ne.s32.totalorder %s419, %s421
    %p428 = scmp.eq.s32.totalorder %s30, 1
    %p429 = por %p427, %p428
    %p430 = scmp.ne.s32.totalorder %s421, %s422
    %p431 = scmp.eq.s32.totalorder %s30, 0
    %p432 = por %p430, %p431
    %p433 = scmp.ne.s32.totalorder %s421, %s422
    %p434 = scmp.eq.s32.totalorder %s31, 1
    %p435 = por %p433, %p434
    %p437 = scmp.ne.s32.totalorder %s422, %s436
    %p438 = scmp.eq.s32.totalorder %s31, 0
    %p439 = por %p437, %p438
    %s441 = sadd.s32 %s440, 1
    %p444 = scmp.eq.s32.totalorder %s25, 1
    %p445 = scmp.ne.s32.totalorder %s440, %s442
    %p446 = scmp.eq.s32.totalorder %s25, 0
    %p447 = por %p445, %p446
    %p448 = scmp.ne.s32.totalorder %s440, %s442
    %p449 = scmp.eq.s32.totalorder %s30, 1
    %p450 = por %p448, %p449
    %p451 = scmp.ne.s32.totalorder %s442, %s443
    %p452 = scmp.eq.s32.totalorder %s30, 0
    %p453 = por %p451, %p452
    %p454 = scmp.ne.s32.totalorder %s442, %s443
    %p455 = scmp.eq.s32.totalorder %s31, 1
    %p456 = por %p454, %p455
    %p458 = scmp.ne.s32.totalorder %s443, %s457
    %p459 = scmp.eq.s32.totalorder %s31, 0
    %p460 = por %p458, %p459
    %s462 = sadd.s32 %s461, 1
    %p465 = scmp.eq.s32.totalorder %s25, 1
    %p466 = scmp.ne.s32.totalorder %s461, %s463
    %p467 = scmp.eq.s32.totalorder %s25, 0
    %p468 = por %p466, %p467
    %p469 = scmp.ne.s32.totalorder %s461, %s463
    %p470 = scmp.eq.s32.totalorder %s30, 1
    %p471 = por %p469, %p470
    %p472 = scmp.ne.s32.totalorder %s463, %s464
    %p473 = scmp.eq.s32.totalorder %s30, 0
    %p474 = por %p472, %p473
    %p475 = scmp.ne.s32.totalorder %s463, %s464
    %p476 = scmp.eq.s32.totalorder %s31, 1
    %p477 = por %p475, %p476
    %p479 = scmp.ne.s32.totalorder %s464, %s478
    %p480 = scmp.eq.s32.totalorder %s31, 0
    %p481 = por %p479, %p480
    %s483 = sadd.s32 %s482, 1
    %p486 = scmp.eq.s32.totalorder %s25, 1
    %p487 = scmp.ne.s32.totalorder %s482, %s484
    %p488 = scmp.eq.s32.totalorder %s25, 0
    %p489 = por %p487, %p488
    %p490 = scmp.ne.s32.totalorder %s482, %s484
    %p491 = scmp.eq.s32.totalorder %s30, 1
    %p492 = por %p490, %p491
    %p493 = scmp.ne.s32.totalorder %s484, %s485
    %p494 = scmp.eq.s32.totalorder %s30, 0
    %p495 = por %p493, %p494
    %p496 = scmp.ne.s32.totalorder %s484, %s485
    %p497 = scmp.eq.s32.totalorder %s31, 1
    %p498 = por %p496, %p497
    %p500 = scmp.ne.s32.totalorder %s485, %s499
    %p501 = scmp.eq.s32.totalorder %s31, 0
    %p502 = por %p500, %p501
    %p503 = scmp.le.s32.totalorder 1, %s25
    %p504 = scmp.lt.s32.totalorder %s25, 3
    %p505 = pnand %p503, %p504
    %p506 = pneg %p505
    // Predicated region
    $region9: #{vit_forward.1} parent=5 // pred_check
      _
    $region10: #{vit_forward.1} parent=5 // pred_check_branch
      %508 = sbr.rel (%p505) target = $region12
    $region11: #{vit_forward.1} parent=5 // pred_region
      %s509 = ssub.s32 %s25, 1
      // Predicated region
      $region13: #{vit_forward.1} parent=11 // pred_check
        %p510 = pneg %p46
      $region14: #{vit_forward.1} parent=11 // pred_check_branch
        %512 = sbr.rel (%p510) target = $region16
      $region15: #{vit_forward.1} parent=11 // pred_region
        _
      $region16: #{vit_forward.1} parent=11 // pred_fallthru
        _
      // Predicated region
      $region17: #{vit_forward.1} parent=11 // pred_check
        %p513 = pneg %p67
      $region18: #{vit_forward.1} parent=11 // pred_check_branch
        %515 = sbr.rel (%p513) target = $region20
      $region19: #{vit_forward.1} parent=11 // pred_region
        _
      $region20: #{vit_forward.1} parent=11 // pred_fallthru
        _
      // Predicated region
      $region21: #{vit_forward.1} parent=11 // pred_check
        %p516 = pneg %p88
      $region22: #{vit_forward.1} parent=11 // pred_check_branch
        %518 = sbr.rel (%p516) target = $region24
      $region23: #{vit_forward.1} parent=11 // pred_region
        _
      $region24: #{vit_forward.1} parent=11 // pred_fallthru
        _
      // Predicated region
      $region25: #{vit_forward.1} parent=11 // pred_check
        %p519 = pneg %p369
      $region26: #{vit_forward.1} parent=11 // pred_check_branch
        %521 = sbr.rel (%p519) target = $region28
      $region27: #{vit_forward.1} parent=11 // pred_region
        _
      $region28: #{vit_forward.1} parent=11 // pred_fallthru
        _
      // Predicated region
      $region29: #{vit_forward.1} parent=11 // pred_check
        %p522 = pneg %p390
      $region30: #{vit_forward.1} parent=11 // pred_check_branch
        %524 = sbr.rel (%p522) target = $region32
      $region31: #{vit_forward.1} parent=11 // pred_region
        _
      $region32: #{vit_forward.1} parent=11 // pred_fallthru
        _
      // Predicated region
      $region33: #{vit_forward.1} parent=11 // pred_check
        %p525 = pneg %p411
      $region34: #{vit_forward.1} parent=11 // pred_check_branch
        %527 = sbr.rel (%p525) target = $region36
      $region35: #{vit_forward.1} parent=11 // pred_region
        _
      $region36: #{vit_forward.1} parent=11 // pred_fallthru
        _
      // Predicated region
      $region37: #{vit_forward.1} parent=11 // pred_check
        %p528 = pneg %p432
      $region38: #{vit_forward.1} parent=11 // pred_check_branch
        %530 = sbr.rel (%p528) target = $region40
      $region39: #{vit_forward.1} parent=11 // pred_region
        _
      $region40: #{vit_forward.1} parent=11 // pred_fallthru
        _
      // Predicated region
      $region41: #{vit_forward.1} parent=11 // pred_check
        %p531 = pneg %p453
      $region42: #{vit_forward.1} parent=11 // pred_check_branch
        %533 = sbr.rel (%p531) target = $region44
      $region43: #{vit_forward.1} parent=11 // pred_region
        _
      $region44: #{vit_forward.1} parent=11 // pred_fallthru
        _
      // Predicated region
      $region45: #{vit_forward.1} parent=11 // pred_check
        %p534 = pneg %p474
      $region46: #{vit_forward.1} parent=11 // pred_check_branch
        %536 = sbr.rel (%p534) target = $region48
      $region47: #{vit_forward.1} parent=11 // pred_region
        _
      $region48: #{vit_forward.1} parent=11 // pred_fallthru
        _
    $region12: #{vit_forward.1} parent=5 // pred_fallthru
      _
    %p537 = scmp.lt.s32.totalorder %s25, 2
    // Predicated region
    $region49: #{vit_forward.1} parent=5 // pred_check
      %p538 = pneg %p537
    $region50: #{vit_forward.1} parent=5 // pred_check_branch
      %540 = sbr.rel (%p538) target = $region52
    $region51: #{vit_forward.1} parent=5 // pred_region
      // Predicated region
      $region53: #{vit_forward.1} parent=51 // pred_check
        %p541 = pneg %p108
      $region54: #{vit_forward.1} parent=51 // pred_check_branch
        %543 = sbr.rel (%p541) target = $region56
      $region55: #{vit_forward.1} parent=51 // pred_region
        %p544 = scmp.lt.s32.totalorder %s25, 1
        %s545 = scalar_select %p544, %s25, 1
        %s546 = scalar_lea.vmem %s3, %s545
      $region56: #{vit_forward.1} parent=51 // pred_fallthru
        _
      // Predicated region
      $region57: #{vit_forward.1} parent=51 // pred_check
        %p547 = pneg %p134
      $region58: #{vit_forward.1} parent=51 // pred_check_branch
        %549 = sbr.rel (%p547) target = $region60
      $region59: #{vit_forward.1} parent=51 // pred_region
        %p550 = scmp.lt.s32.totalorder %s25, 1
        %s551 = scalar_select %p550, %s25, 1
        %s552 = scalar_lea.vmem %s4, %s551
      $region60: #{vit_forward.1} parent=51 // pred_fallthru
        _
      // Predicated region
      $region61: #{vit_forward.1} parent=51 // pred_check
        %p553 = pneg %p160
      $region62: #{vit_forward.1} parent=51 // pred_check_branch
        %555 = sbr.rel (%p553) target = $region64
      $region63: #{vit_forward.1} parent=51 // pred_region
        %p556 = scmp.lt.s32.totalorder %s25, 1
        %s557 = scalar_select %p556, %s25, 1
        %s558 = smul.addr %s557, 16
        %s559 = smul.addr %s558, 8
        %s560 = scalar_lea.vmem %s5, %s559
      $region64: #{vit_forward.1} parent=51 // pred_fallthru
        _
      // Predicated region
      $region65: #{vit_forward.1} parent=51 // pred_check
        %p561 = pneg %p186
      $region66: #{vit_forward.1} parent=51 // pred_check_branch
        %563 = sbr.rel (%p561) target = $region68
      $region67: #{vit_forward.1} parent=51 // pred_region
        %p564 = scmp.lt.s32.totalorder %s25, 1
        %s565 = scalar_select %p564, %s25, 1
        %s566 = smul.addr %s565, 2
        %s567 = scalar_lea.vmem %s6, %s566
      $region68: #{vit_forward.1} parent=51 // pred_fallthru
        _
      // Predicated region
      $region69: #{vit_forward.1} parent=51 // pred_check
        %p568 = pneg %p212
      $region70: #{vit_forward.1} parent=51 // pred_check_branch
        %570 = sbr.rel (%p568) target = $region72
      $region71: #{vit_forward.1} parent=51 // pred_region
        %p571 = scmp.lt.s32.totalorder %s25, 1
        %s572 = scalar_select %p571, %s25, 1
        %s573 = smul.addr %s572, 8
        %s574 = smul.addr %s573, 8
        %s575 = scalar_lea.vmem %s7, %s574
      $region72: #{vit_forward.1} parent=51 // pred_fallthru
        _
      // Predicated region
      $region73: #{vit_forward.1} parent=51 // pred_check
        %p576 = pneg %p238
      $region74: #{vit_forward.1} parent=51 // pred_check_branch
        %578 = sbr.rel (%p576) target = $region76
      $region75: #{vit_forward.1} parent=51 // pred_region
        %p579 = scmp.lt.s32.totalorder %s25, 1
        %s580 = scalar_select %p579, %s25, 1
        %s581 = scalar_lea.vmem %s8, %s580
      $region76: #{vit_forward.1} parent=51 // pred_fallthru
        _
      // Predicated region
      $region77: #{vit_forward.1} parent=51 // pred_check
        %p582 = pneg %p264
      $region78: #{vit_forward.1} parent=51 // pred_check_branch
        %584 = sbr.rel (%p582) target = $region80
      $region79: #{vit_forward.1} parent=51 // pred_region
        %p585 = scmp.lt.s32.totalorder %s25, 1
        %s586 = scalar_select %p585, %s25, 1
        %s587 = smul.addr %s586, 16
        %s588 = smul.addr %s587, 8
        %s589 = scalar_lea.vmem %s9, %s588
      $region80: #{vit_forward.1} parent=51 // pred_fallthru
        _
      // Predicated region
      $region81: #{vit_forward.1} parent=51 // pred_check
        %p590 = pneg %p290
      $region82: #{vit_forward.1} parent=51 // pred_check_branch
        %592 = sbr.rel (%p590) target = $region84
      $region83: #{vit_forward.1} parent=51 // pred_region
        %p593 = scmp.lt.s32.totalorder %s25, 1
        %s594 = scalar_select %p593, %s25, 1
        %s595 = smul.addr %s594, 2
        %s596 = scalar_lea.vmem %s10, %s595
      $region84: #{vit_forward.1} parent=51 // pred_fallthru
        _
      // Predicated region
      $region85: #{vit_forward.1} parent=51 // pred_check
        %p597 = pneg %p316
      $region86: #{vit_forward.1} parent=51 // pred_check_branch
        %599 = sbr.rel (%p597) target = $region88
      $region87: #{vit_forward.1} parent=51 // pred_region
        %p600 = scmp.lt.s32.totalorder %s25, 1
        %s601 = scalar_select %p600, %s25, 1
        %s602 = smul.addr %s601, 32
        %s603 = smul.addr %s602, 8
        %s604 = scalar_lea.vmem %s11, %s603
      $region88: #{vit_forward.1} parent=51 // pred_fallthru
        _
      // Predicated region
      $region89: #{vit_forward.1} parent=51 // pred_check
        %p605 = pneg %p342
      $region90: #{vit_forward.1} parent=51 // pred_check_branch
        %607 = sbr.rel (%p605) target = $region92
      $region91: #{vit_forward.1} parent=51 // pred_region
        %p608 = scmp.lt.s32.totalorder %s25, 1
        %s609 = scalar_select %p608, %s25, 1
        %s610 = scalar_lea.vmem %s12, %s609
      $region92: #{vit_forward.1} parent=51 // pred_fallthru
        _
    $region52: #{vit_forward.1} parent=5 // pred_fallthru
      _
    %p611 = scmp.le.s32.totalorder 1, %s25
    %p612 = scmp.lt.s32.totalorder %s25, 3
    %p613 = pnand %p611, %p612
    %p614 = pneg %p613
    // Predicated region
    $region93: #{vit_forward.1} parent=5 // pred_check
      _
    $region94: #{vit_forward.1} parent=5 // pred_check_branch
      %616 = sbr.rel (%p613) target = $region96
    $region95: #{vit_forward.1} parent=5 // pred_region
      %s617 = ssub.s32 %s25, 1
      %p618 = pneg %p46
      %p619 = pneg %p43
      %p620 = pneg %p67
      %p621 = pneg %p64
      %p622 = pneg %p88
      %p623 = pneg %p85
      %p624 = scmp.lt.s32.totalorder %s30, 1
      %s625 = scalar_select %p624, %s30, 1
      %s626 = scalar_lea.vmem %s3, %s625
      %p627 = pneg %p114
      %p628 = pneg %p111
      %p629 = scmp.lt.s32.totalorder %s30, 1
      %s630 = scalar_select %p629, %s30, 1
      %s631 = scalar_lea.vmem %s4, %s630
      %p632 = pneg %p140
      %p633 = pneg %p137
      %p634 = scmp.lt.s32.totalorder %s30, 1
      %s635 = scalar_select %p634, %s30, 1
      %s636 = smul.addr %s635, 16
      %s637 = smul.addr %s636, 8
      %s638 = scalar_lea.vmem %s5, %s637
      %p639 = pneg %p166
      %p640 = pneg %p163
      %p641 = scmp.lt.s32.totalorder %s30, 1
      %s642 = scalar_select %p641, %s30, 1
      %s643 = smul.addr %s642, 2
      %s644 = scalar_lea.vmem %s6, %s643
      %p645 = pneg %p192
      %p646 = pneg %p189
      %p647 = scmp.lt.s32.totalorder %s30, 1
      %s648 = scalar_select %p647, %s30, 1
      %s649 = smul.addr %s648, 8
      %s650 = smul.addr %s649, 8
      %s651 = scalar_lea.vmem %s7, %s650
      %p652 = pneg %p218
      %p653 = pneg %p215
      %p654 = scmp.lt.s32.totalorder %s30, 1
      %s655 = scalar_select %p654, %s30, 1
      %s656 = scalar_lea.vmem %s8, %s655
      %p657 = pneg %p244
      %p658 = pneg %p241
      %p659 = scmp.lt.s32.totalorder %s30, 1
      %s660 = scalar_select %p659, %s30, 1
      %s661 = smul.addr %s660, 16
      %s662 = smul.addr %s661, 8
      %s663 = scalar_lea.vmem %s9, %s662
      %p664 = pneg %p270
      %p665 = pneg %p267
      %p666 = scmp.lt.s32.totalorder %s30, 1
      %s667 = scalar_select %p666, %s30, 1
      %s668 = smul.addr %s667, 2
      %s669 = scalar_lea.vmem %s10, %s668
      %p670 = pneg %p296
      %p671 = pneg %p293
      %p672 = scmp.lt.s32.totalorder %s30, 1
      %s673 = scalar_select %p672, %s30, 1
      %s674 = smul.addr %s673, 32
      %s675 = smul.addr %s674, 8
      %s676 = scalar_lea.vmem %s11, %s675
      %p677 = pneg %p322
      %p678 = pneg %p319
      %p679 = scmp.lt.s32.totalorder %s30, 1
      %s680 = scalar_select %p679, %s30, 1
      %s681 = scalar_lea.vmem %s12, %s680
      %p682 = pneg %p348
      %p683 = pneg %p345
      %p684 = pneg %p369
      %p685 = pneg %p366
      %p686 = pneg %p390
      %p687 = pneg %p387
      %p688 = pneg %p411
      %p689 = pneg %p408
      %p690 = pneg %p432
      %p691 = pneg %p429
      %p692 = pneg %p453
      %p693 = pneg %p450
      %p694 = pneg %p474
      %p695 = pneg %p471
      %p696 = pneg %p495
      %p697 = pneg %p492
      %p698 = scmp.lt.s32.totalorder %s30, 1
      %s699 = scalar_select %p698, %s30, 1
      %s700 = scalar_lea.vmem %s3, %s699
      %p701 = scmp.lt.s32.totalorder %s30, 1
      %s702 = scalar_select %p701, %s30, 1
      %s703 = scalar_lea.vmem %s4, %s702
      %p704 = scmp.lt.s32.totalorder %s30, 1
      %s705 = scalar_select %p704, %s30, 1
      %s706 = smul.addr %s705, 16
      %s707 = smul.addr %s706, 8
      %s708 = scalar_lea.vmem %s5, %s707
      %p709 = scmp.lt.s32.totalorder %s30, 1
      %s710 = scalar_select %p709, %s30, 1
      %s711 = smul.addr %s710, 2
      %s712 = scalar_lea.vmem %s6, %s711
      %p713 = scmp.lt.s32.totalorder %s30, 1
      %s714 = scalar_select %p713, %s30, 1
      %s715 = smul.addr %s714, 8
      %s716 = smul.addr %s715, 8
      %s717 = scalar_lea.vmem %s7, %s716
      %p718 = scmp.lt.s32.totalorder %s30, 1
      %s719 = scalar_select %p718, %s30, 1
      %s720 = scalar_lea.vmem %s8, %s719
      %p721 = scmp.lt.s32.totalorder %s30, 1
      %s722 = scalar_select %p721, %s30, 1
      %s723 = smul.addr %s722, 16
      %s724 = smul.addr %s723, 8
      %s725 = scalar_lea.vmem %s9, %s724
      %p726 = scmp.lt.s32.totalorder %s30, 1
      %s727 = scalar_select %p726, %s30, 1
      %s728 = smul.addr %s727, 2
      %s729 = scalar_lea.vmem %s10, %s728
      %p730 = scmp.lt.s32.totalorder %s30, 1
      %s731 = scalar_select %p730, %s30, 1
      %s732 = smul.addr %s731, 32
      %s733 = smul.addr %s732, 8
      %s734 = scalar_lea.vmem %s11, %s733
      %p735 = scmp.lt.s32.totalorder %s30, 1
      %s736 = scalar_select %p735, %s30, 1
      %s737 = scalar_lea.vmem %s12, %s736
      %p738 = scmp.eq.s32.totalorder %s30, 0
      // Predicated region
      $region97: #{vit_forward.1} parent=95 // pred_check
        %p739 = pneg %p738
      $region98: #{vit_forward.1} parent=95 // pred_check_branch
        %741 = sbr.rel (%p739) target = $region100
      $region99: #{vit_forward.1} parent=95 // pred_region
        %v742 = vld [vmem:[%s0] sm:$0xff]
        %v743 = vld [vmem:[%s0 + $0x8] sm:$0xff]
        %v744 = vld [vmem:[%s0 + $0x10] sm:$0xff]
        %v745 = vld [vmem:[%s0 + $0x18] sm:$0xff]
        %v746 = vld [vmem:[%s0 + $0x20] sm:$0xff]
        %v747 = vld [vmem:[%s0 + $0x28] sm:$0xff]
        %v748 = vld [vmem:[%s1] sm:$0xff]
        %v749 = vld [vmem:[%s1 + $0x8] sm:$0xff]
        %v750 = vld [vmem:[%s1 + $0x10] sm:$0xff]
        %v751 = vld [vmem:[%s1 + $0x18] sm:$0xff]
        %v752 = vld [vmem:[%s1 + $0x20] sm:$0xff]
        %v753 = vld [vmem:[%s1 + $0x28] sm:$0xff]
        %v754 = vld [vmem:[%s1 + $0x30] sm:$0xff]
        %v755 = vld [vmem:[%s1 + $0x38] sm:$0xff]
        %v756 = vld [vmem:[%s1 + $0x40] sm:$0xff]
        %v757 = vld [vmem:[%s1 + $0x48] sm:$0xff]
        %v758 = vld [vmem:[%s1 + $0x50] sm:$0xff]
        %v759 = vld [vmem:[%s1 + $0x58] sm:$0xff]
        %v760 = vld [vmem:[%s1 + $0x60] sm:$0xff]
        %v761 = vld [vmem:[%s1 + $0x68] sm:$0xff]
        %v762 = vld [vmem:[%s1 + $0x70] sm:$0xff]
        %v763 = vld [vmem:[%s1 + $0x78] sm:$0xff]
        %v764 = vld [vmem:[%s1 + $0x80] sm:$0xff]
        %v765 = vld [vmem:[%s1 + $0x88] sm:$0xff]
        %v766 = vld [vmem:[%s1 + $0x90] sm:$0xff]
        %v767 = vld [vmem:[%s1 + $0x98] sm:$0xff]
        %v768 = vld [vmem:[%s1 + $0xa0] sm:$0xff]
        %v769 = vld [vmem:[%s1 + $0xa8] sm:$0xff]
        %v770 = vld [vmem:[%s1 + $0xb0] sm:$0xff]
        %v771 = vld [vmem:[%s1 + $0xb8] sm:$0xff]
        %v772 = vld [vmem:[%s2] sm:$0xff]
        %v773 = vld [vmem:[%s2 + $0x8] sm:$0xff]
        %v774 = vld [vmem:[%s2 + $0x10] sm:$0xff]
        %vm775 = vcmask 523264
        %v777 = vsel %vm775, %v743, 0
        %v780 = vsel %vm775, %v745, 0
        %v783 = vsel %vm775, %v747, 0
        %785 = vmatprep.subr.mxu0 0.0
        %786 = vmatpush1.msra.mxu0 %v763
        %787 = vmatprep.subr.mxu0 0.0
        %788 = vmatpush1.msra.mxu0 %v762
        %789 = vmatprep.subr.mxu0 0.0
        %790 = vmatpush1.msra.mxu0 %v761
        %791 = vmatprep.subr.mxu0 0.0
        %792 = vmatpush1.msra.mxu0 %v760
        %793 = vmatprep.subr.mxu0 0.0
        %794 = vmatpush1.msra.mxu0 %v759
        %795 = vmatprep.subr.mxu0 0.0
        %796 = vmatpush1.msra.mxu0 %v758
        %797 = vmatprep.subr.mxu0 0.0
        %798 = vmatpush1.msra.mxu0 %v757
        %799 = vmatprep.subr.mxu0 0.0
        %800 = vmatpush1.msra.mxu0 %v756
        %801 = vmatprep.subr.mxu0 0.0
        %802 = vmatpush1.msra.mxu0 %v755
        %803 = vmatprep.subr.mxu0 0.0
        %804 = vmatpush1.msra.mxu0 %v754
        %805 = vmatprep.subr.mxu0 0.0
        %806 = vmatpush1.msra.mxu0 %v753
        %807 = vmatprep.subr.mxu0 0.0
        %808 = vmatpush1.msra.mxu0 %v752
        %809 = vmatprep.subr.mxu0 0.0
        %810 = vmatpush1.msra.mxu0 %v751
        %811 = vmatprep.subr.mxu0 0.0
        %812 = vmatpush1.msra.mxu0 %v750
        %813 = vmatprep.subr.mxu0 0.0
        %814 = vmatpush1.msra.mxu0 %v749
        %815 = vmatprep.subr.mxu0 0.0
        %816 = vmatpush1.msra.mxu0 %v748
        %817 = vmatprep.subr.mxu0 0.0
        %818 = vmatpush2.msra.mxu0 0.0
        %819 = vmatprep.subr.mxu0 0.0
        %820 = vmatpush2.msra.mxu0 0.0
        %821 = vmatprep.subr.mxu0 0.0
        %822 = vmatpush2.msra.mxu0 0.0
        %823 = vmatprep.subr.mxu0 0.0
        %824 = vmatpush2.msra.mxu0 0.0
        %825 = vmatprep.subr.mxu0 0.0
        %826 = vmatpush2.msra.mxu0 0.0
        %827 = vmatprep.subr.mxu0 0.0
        %828 = vmatpush2.msra.mxu0 0.0
        %829 = vmatprep.subr.mxu0 0.0
        %830 = vmatpush2.msra.mxu0 0.0
        %831 = vmatprep.subr.mxu0 0.0
        %832 = vmatpush2.msra.mxu0 0.0
        %833 = vmatprep.subr.mxu0 0.0
        %834 = vmatpush2.msra.mxu0 %v771
        %835 = vmatprep.subr.mxu0 0.0
        %836 = vmatpush2.msra.mxu0 %v770
        %837 = vmatprep.subr.mxu0 0.0
        %838 = vmatpush2.msra.mxu0 %v769
        %839 = vmatprep.subr.mxu0 0.0
        %840 = vmatpush2.msra.mxu0 %v768
        %841 = vmatprep.subr.mxu0 0.0
        %842 = vmatpush2.msra.mxu0 %v767
        %843 = vmatprep.subr.mxu0 0.0
        %844 = vmatpush2.msra.mxu0 %v766
        %845 = vmatprep.subr.mxu0 0.0
        %846 = vmatpush2.msra.mxu0 %v765
        %847 = vmatprep.subr.mxu0 0.0
        %848 = vmatpush2.msra.mxu0 %v764
        %849 = vmatprep.mubr.f32.mxu0 %v777
        %850 = vmatmul.mubr.f32.gmra.mxu0 %v742
        %v851 = vpop.f32.mrf.mxu0
        %v852 = vadd.f32 %v772, %v851
        %v853 = vpop.f32.mrf.mxu0
        %854 = vmatprep.mubr.f32.mxu0 %v780
        %855 = vmatmul.mubr.f32.gmra.mxu0 %v744
        %v856 = vpop.f32.mrf.mxu0
        %v857 = vadd.f32 %v773, %v856
        %v858 = vpop.f32.mrf.mxu0
        %859 = vmatprep.mubr.f32.mxu0 %v783
        %860 = vmatmul.mubr.f32.gmra.mxu0 %v746
        %v861 = vpop.f32.mrf.mxu0
        %v862 = vadd.f32 %v774, %v861
        %v863 = vpop.f32.mrf.mxu0
        %864 = vdwg.mxu0
        %865 = vst.msk [vmem:[#allocation2] sm:$0xff] %vm775, %v852
        %866 = vst.msk [vmem:[#allocation2 + $0x8] sm:$0xff] %vm775, %v857
        %867 = vst.msk [vmem:[#allocation2 + $0x10] sm:$0xff] %vm775, %v862
      $region100: #{vit_forward.1} parent=95 // pred_fallthru
        _
      %v868 = vld [vmem:[#allocation2] sm:$0xff]
      %v869 = vld [vmem:[#allocation2 + $0x8] sm:$0xff]
      %v870 = vld [vmem:[#allocation2 + $0x10] sm:$0xff]
      %v871 = vld [vmem:[%s700] sm:$0x1]
      %v872 = vld [vmem:[%s703] sm:$0x1]
      %vm873 = vcmask 523264
      %v874 = vsel %vm873, %v868, 0.0
      %875 = vadd.xlane.f32.xlu0 %v874
      %v876 = vpop.xlane.xlu0 %875
      %v877 = vsel %vm873, %v869, 0.0
      %878 = vadd.xlane.f32.xlu0 %v877
      %v879 = vpop.xlane.xlu0 %878
      %v880 = vsel %vm873, %v870, 0.0
      %881 = vadd.xlane.f32.xlu0 %v880
      %v882 = vpop.xlane.xlu0 %881
      %v883 = vrcp.pop 64.0
      %v884 = vmul.f32 %v876, %v883
      %v885 = vmul.f32 %v879, %v883
      %v886 = vmul.f32 %v882, %v883
      %v887 = vsub.f32 %v868, %v884
      %v888 = vsub.f32 %v869, %v885
      %v889 = vsub.f32 %v870, %v886
      %v890 = vmul.f32 %v887, %v887
      %v891 = vmul.f32 %v888, %v888
      %v892 = vmul.f32 %v889, %v889
      %v893 = vsel %vm873, %v890, 0.0
      %894 = vadd.xlane.f32.xlu0 %v893
      %v895 = vpop.xlane.xlu0 %894
      %v896 = vsel %vm873, %v891, 0.0
      %897 = vadd.xlane.f32.xlu0 %v896
      %v898 = vpop.xlane.xlu0 %897
      %v899 = vsel %vm873, %v892, 0.0
      %900 = vadd.xlane.f32.xlu0 %v899
      %v901 = vpop.xlane.xlu0 %900
      %v902 = vmul.f32 %v895, %v883
      %v903 = vmul.f32 %v898, %v883
      %v904 = vmul.f32 %v901, %v883
      %v905 = vadd.f32 %v902, 1e-05
      %v906 = vadd.f32 %v903, 1e-05
      %v907 = vadd.f32 %v904, 1e-05
      %v908 = vrsqrt.pop %v905
      %v909 = vrsqrt.pop %v906
      %v910 = vrsqrt.pop %v907
      %v911 = vmul.f32 %v887, %v908
      %v912 = vmul.f32 %v888, %v909
      %v913 = vmul.f32 %v889, %v910
      %v915 = vlaneseq
      %v916 = vshrl.u32 %v915, 7
      %v917 = vsub.s32 0, %v916
      %v918 = vrot.slane %v871, %v917
      %v920 = vmul.f32 %v911, %v918
      %v921 = vmul.f32 %v912, %v918
      %v922 = vmul.f32 %v913, %v918
      %v924 = vlaneseq
      %v925 = vshrl.u32 %v924, 7
      %v926 = vsub.s32 0, %v925
      %v927 = vrot.slane %v872, %v926
      %v929 = vadd.f32 %v920, %v927
      %v930 = vadd.f32 %v921, %v927
      %v931 = vadd.f32 %v922, %v927
      %v932 = vld [vmem:[%s708] sm:$0xff]
      %v933 = vld [vmem:[%s708 + $0x8] sm:$0xff]
      %v934 = vld [vmem:[%s708 + $0x10] sm:$0xff]
      %v935 = vld [vmem:[%s708 + $0x18] sm:$0xff]
      %v936 = vld [vmem:[%s708 + $0x20] sm:$0xff]
      %v937 = vld [vmem:[%s708 + $0x28] sm:$0xff]
      %v938 = vld [vmem:[%s708 + $0x30] sm:$0xff]
      %v939 = vld [vmem:[%s708 + $0x38] sm:$0xff]
      %v940 = vld [vmem:[%s708 + $0x40] sm:$0xff]
      %v941 = vld [vmem:[%s708 + $0x48] sm:$0xff]
      %v942 = vld [vmem:[%s708 + $0x50] sm:$0xff]
      %v943 = vld [vmem:[%s708 + $0x58] sm:$0xff]
      %v944 = vld [vmem:[%s708 + $0x60] sm:$0xff]
      %v945 = vld [vmem:[%s708 + $0x68] sm:$0xff]
      %v946 = vld [vmem:[%s708 + $0x70] sm:$0xff]
      %v947 = vld [vmem:[%s708 + $0x78] sm:$0xff]
      %v948 = vld [vmem:[%s712] sm:$0x3]
      %v950 = vlaneseq
      %v951 = vshrl.u32 %v950, 7
      %v952 = vsub.s32 1, %v951
      %v953 = vrot.slane %v948, %v952
      %v956 = vsel %vm873, %v929, 0
      %v959 = vsel %vm873, %v930, 0
      %v962 = vsel %vm873, %v931, 0
      %964 = vmatprep.subr.mxu0 0.0
      %965 = vmatpush1.msra.mxu0 0.0
      %966 = vmatprep.subr.mxu0 0.0
      %967 = vmatpush1.msra.mxu0 0.0
      %968 = vmatprep.subr.mxu0 0.0
      %969 = vmatpush1.msra.mxu0 0.0
      %970 = vmatprep.subr.mxu0 0.0
      %971 = vmatpush1.msra.mxu0 0.0
      %972 = vmatprep.subr.mxu0 0.0
      %973 = vmatpush1.msra.mxu0 0.0
      %974 = vmatprep.subr.mxu0 0.0
      %975 = vmatpush1.msra.mxu0 0.0
      %976 = vmatprep.subr.mxu0 0.0
      %977 = vmatpush1.msra.mxu0 0.0
      %978 = vmatprep.subr.mxu0 0.0
      %979 = vmatpush1.msra.mxu0 0.0
      %980 = vmatprep.subr.mxu0 %v947
      %981 = vmatpush1.msra.mxu0 %v946
      %982 = vmatprep.subr.mxu0 %v945
      %983 = vmatpush1.msra.mxu0 %v944
      %984 = vmatprep.subr.mxu0 %v943
      %985 = vmatpush1.msra.mxu0 %v942
      %986 = vmatprep.subr.mxu0 %v941
      %987 = vmatpush1.msra.mxu0 %v940
      %988 = vmatprep.subr.mxu0 %v939
      %989 = vmatpush1.msra.mxu0 %v938
      %990 = vmatprep.subr.mxu0 %v937
      %991 = vmatpush1.msra.mxu0 %v936
      %992 = vmatprep.subr.mxu0 %v935
      %993 = vmatpush1.msra.mxu0 %v934
      %994 = vmatprep.subr.mxu0 %v933
      %995 = vmatpush1.msra.mxu0 %v932
      %996 = vmatprep.subr.mxu0 0.0
      %997 = vmatpush2.msra.mxu0 0.0
      %998 = vmatprep.subr.mxu0 0.0
      %999 = vmatpush2.msra.mxu0 0.0
      %1000 = vmatprep.subr.mxu0 0.0
      %1001 = vmatpush2.msra.mxu0 0.0
      %1002 = vmatprep.subr.mxu0 0.0
      %1003 = vmatpush2.msra.mxu0 0.0
      %1004 = vmatprep.subr.mxu0 0.0
      %1005 = vmatpush2.msra.mxu0 0.0
      %1006 = vmatprep.subr.mxu0 0.0
      %1007 = vmatpush2.msra.mxu0 0.0
      %1008 = vmatprep.subr.mxu0 0.0
      %1009 = vmatpush2.msra.mxu0 0.0
      %1010 = vmatprep.subr.mxu0 0.0
      %1011 = vmatpush2.msra.mxu0 0.0
      %1012 = vmatprep.subr.mxu0 0.0
      %1013 = vmatpush2.msra.mxu0 0.0
      %1014 = vmatprep.subr.mxu0 0.0
      %1015 = vmatpush2.msra.mxu0 0.0
      %1016 = vmatprep.subr.mxu0 0.0
      %1017 = vmatpush2.msra.mxu0 0.0
      %1018 = vmatprep.subr.mxu0 0.0
      %1019 = vmatpush2.msra.mxu0 0.0
      %1020 = vmatprep.subr.mxu0 0.0
      %1021 = vmatpush2.msra.mxu0 0.0
      %1022 = vmatprep.subr.mxu0 0.0
      %1023 = vmatpush2.msra.mxu0 0.0
      %1024 = vmatprep.subr.mxu0 0.0
      %1025 = vmatpush2.msra.mxu0 0.0
      %1026 = vmatprep.subr.mxu0 0.0
      %1027 = vmatpush2.msra.mxu0 0.0
      %1028 = vmatprep.mubr.f32.mxu0 0.0
      %1029 = vmatmul.mubr.f32.gmra.mxu0 %v956
      %v1030 = vpop.f32.mrf.mxu0
      %v1031 = vpop.f32.mrf.mxu0
      %v1032 = vadd.f32 %v953, %v1031
      %1033 = vmatprep.mubr.f32.mxu0 0.0
      %1034 = vmatmul.mubr.f32.gmra.mxu0 %v959
      %v1035 = vpop.f32.mrf.mxu0
      %v1036 = vpop.f32.mrf.mxu0
      %v1037 = vadd.f32 %v953, %v1036
      %1038 = vmatprep.mubr.f32.mxu0 0.0
      %1039 = vmatmul.mubr.f32.gmra.mxu0 %v962
      %v1040 = vpop.f32.mrf.mxu0
      %v1041 = vpop.f32.mrf.mxu0
      %v1042 = vadd.f32 %v953, %v1041
      %1043 = vdwg.mxu0
      %v1044 = vld [vmem:[%s717] sm:$0xff]
      %v1045 = vld [vmem:[%s717 + $0x8] sm:$0xff]
      %v1046 = vld [vmem:[%s717 + $0x10] sm:$0xff]
      %v1047 = vld [vmem:[%s717 + $0x18] sm:$0xff]
      %v1048 = vld [vmem:[%s717 + $0x20] sm:$0xff]
      %v1049 = vld [vmem:[%s717 + $0x28] sm:$0xff]
      %v1050 = vld [vmem:[%s717 + $0x30] sm:$0xff]
      %v1051 = vld [vmem:[%s717 + $0x38] sm:$0xff]
      %v1052 = vld [vmem:[%s720] sm:$0x1]
      %v1054 = vlaneseq
      %v1055 = vshrl.u32 %v1054, 7
      %v1056 = vsub.s32 0, %v1055
      %v1057 = vrot.slane %v1052, %v1056
      %v1060 = vsel %vm873, %v1032, 0
      %v1063 = vsel %vm873, %v1037, 0
      %v1066 = vsel %vm873, %v1042, 0
      %1068 = vmatprep.subr.mxu0 0.0
      %1069 = vmatpush1.msra.mxu0 0.0
      %1070 = vmatprep.subr.mxu0 0.0
      %1071 = vmatpush1.msra.mxu0 0.0
      %1072 = vmatprep.subr.mxu0 0.0
      %1073 = vmatpush1.msra.mxu0 0.0
      %1074 = vmatprep.subr.mxu0 0.0
      %1075 = vmatpush1.msra.mxu0 0.0
      %1076 = vmatprep.subr.mxu0 0.0
      %1077 = vmatpush1.msra.mxu0 0.0
      %1078 = vmatprep.subr.mxu0 0.0
      %1079 = vmatpush1.msra.mxu0 0.0
      %1080 = vmatprep.subr.mxu0 0.0
      %1081 = vmatpush1.msra.mxu0 0.0
      %1082 = vmatprep.subr.mxu0 0.0
      %1083 = vmatpush1.msra.mxu0 0.0
      %1084 = vmatprep.subr.mxu0 0.0
      %1085 = vmatpush1.msra.mxu0 %v1051
      %1086 = vmatprep.subr.mxu0 0.0
      %1087 = vmatpush1.msra.mxu0 %v1050
      %1088 = vmatprep.subr.mxu0 0.0
      %1089 = vmatpush1.msra.mxu0 %v1049
      %1090 = vmatprep.subr.mxu0 0.0
      %1091 = vmatpush1.msra.mxu0 %v1048
      %1092 = vmatprep.subr.mxu0 0.0
      %1093 = vmatpush1.msra.mxu0 %v1047
      %1094 = vmatprep.subr.mxu0 0.0
      %1095 = vmatpush1.msra.mxu0 %v1046
      %1096 = vmatprep.subr.mxu0 0.0
      %1097 = vmatpush1.msra.mxu0 %v1045
      %1098 = vmatprep.subr.mxu0 0.0
      %1099 = vmatpush1.msra.mxu0 %v1044
      %1100 = vmatprep.subr.mxu0 0.0
      %1101 = vmatpush2.msra.mxu0 0.0
      %1102 = vmatprep.subr.mxu0 0.0
      %1103 = vmatpush2.msra.mxu0 0.0
      %1104 = vmatprep.subr.mxu0 0.0
      %1105 = vmatpush2.msra.mxu0 0.0
      %1106 = vmatprep.subr.mxu0 0.0
      %1107 = vmatpush2.msra.mxu0 0.0
      %1108 = vmatprep.subr.mxu0 0.0
      %1109 = vmatpush2.msra.mxu0 0.0
      %1110 = vmatprep.subr.mxu0 0.0
      %1111 = vmatpush2.msra.mxu0 0.0
      %1112 = vmatprep.subr.mxu0 0.0
      %1113 = vmatpush2.msra.mxu0 0.0
      %1114 = vmatprep.subr.mxu0 0.0
      %1115 = vmatpush2.msra.mxu0 0.0
      %1116 = vmatprep.subr.mxu0 0.0
      %1117 = vmatpush2.msra.mxu0 0.0
      %1118 = vmatprep.subr.mxu0 0.0
      %1119 = vmatpush2.msra.mxu0 0.0
      %1120 = vmatprep.subr.mxu0 0.0
      %1121 = vmatpush2.msra.mxu0 0.0
      %1122 = vmatprep.subr.mxu0 0.0
      %1123 = vmatpush2.msra.mxu0 0.0
      %1124 = vmatprep.subr.mxu0 0.0
      %1125 = vmatpush2.msra.mxu0 0.0
      %1126 = vmatprep.subr.mxu0 0.0
      %1127 = vmatpush2.msra.mxu0 0.0
      %1128 = vmatprep.subr.mxu0 0.0
      %1129 = vmatpush2.msra.mxu0 0.0
      %1130 = vmatprep.subr.mxu0 0.0
      %1131 = vmatpush2.msra.mxu0 0.0
      %1132 = vmatprep.mubr.f32.mxu0 0.0
      %1133 = vmatmul.mubr.f32.gmra.mxu0 %v1060
      %v1134 = vpop.f32.mrf.mxu0
      %v1135 = vadd.f32 %v1057, %v1134
      %v1136 = vpop.f32.mrf.mxu0
      %1137 = vmatprep.mubr.f32.mxu0 0.0
      %1138 = vmatmul.mubr.f32.gmra.mxu0 %v1063
      %v1139 = vpop.f32.mrf.mxu0
      %v1140 = vadd.f32 %v1057, %v1139
      %v1141 = vpop.f32.mrf.mxu0
      %1142 = vmatprep.mubr.f32.mxu0 0.0
      %1143 = vmatmul.mubr.f32.gmra.mxu0 %v1066
      %v1144 = vpop.f32.mrf.mxu0
      %v1145 = vadd.f32 %v1057, %v1144
      %v1146 = vpop.f32.mrf.mxu0
      %1147 = vdwg.mxu0
      %v1148 = vadd.f32 %v868, %v1135
      %v1149 = vadd.f32 %v869, %v1140
      %v1150 = vadd.f32 %v870, %v1145
      %v1151 = vsel %vm873, %v1148, 0.0
      %1152 = vadd.xlane.f32.xlu0 %v1151
      %v1153 = vpop.xlane.xlu0 %1152
      %v1154 = vsel %vm873, %v1149, 0.0
      %1155 = vadd.xlane.f32.xlu0 %v1154
      %v1156 = vpop.xlane.xlu0 %1155
      %v1157 = vsel %vm873, %v1150, 0.0
      %1158 = vadd.xlane.f32.xlu0 %v1157
      %v1159 = vpop.xlane.xlu0 %1158
      %v1160 = vmul.f32 %v1153, %v883
      %v1161 = vmul.f32 %v1156, %v883
      %v1162 = vmul.f32 %v1159, %v883
      %v1163 = vsub.f32 %v1148, %v1160
      %v1164 = vsub.f32 %v1149, %v1161
      %v1165 = vsub.f32 %v1150, %v1162
      %v1166 = vmul.f32 %v1163, %v1163
      %v1167 = vmul.f32 %v1164, %v1164
      %v1168 = vmul.f32 %v1165, %v1165
      %v1169 = vsel %vm873, %v1166, 0.0
      %1170 = vadd.xlane.f32.xlu0 %v1169
      %v1171 = vpop.xlane.xlu0 %1170
      %v1172 = vsel %vm873, %v1167, 0.0
      %1173 = vadd.xlane.f32.xlu0 %v1172
      %v1174 = vpop.xlane.xlu0 %1173
      %v1175 = vsel %vm873, %v1168, 0.0
      %1176 = vadd.xlane.f32.xlu0 %v1175
      %v1177 = vpop.xlane.xlu0 %1176
      %v1178 = vmul.f32 %v1171, %v883
      %v1179 = vmul.f32 %v1174, %v883
      %v1180 = vmul.f32 %v1177, %v883
      %v1181 = vadd.f32 %v1178, 1e-05
      %v1182 = vadd.f32 %v1179, 1e-05
      %v1183 = vadd.f32 %v1180, 1e-05
      %v1184 = vrsqrt.pop %v1181
      %v1185 = vrsqrt.pop %v1182
      %v1186 = vrsqrt.pop %v1183
      %v1187 = vmul.f32 %v1163, %v1184
      %v1188 = vmul.f32 %v1164, %v1185
      %v1189 = vmul.f32 %v1165, %v1186
      %v1190 = vmul.f32 %v1187, %v918
      %v1191 = vmul.f32 %v1188, %v918
      %v1192 = vmul.f32 %v1189, %v918
      %v1193 = vadd.f32 %v1190, %v927
      %v1194 = vadd.f32 %v1191, %v927
      %v1195 = vadd.f32 %v1192, %v927
      %v1196 = vld [vmem:[%s725] sm:$0xff]
      %v1197 = vld [vmem:[%s725 + $0x8] sm:$0xff]
      %v1198 = vld [vmem:[%s725 + $0x10] sm:$0xff]
      %v1199 = vld [vmem:[%s725 + $0x18] sm:$0xff]
      %v1200 = vld [vmem:[%s725 + $0x20] sm:$0xff]
      %v1201 = vld [vmem:[%s725 + $0x28] sm:$0xff]
      %v1202 = vld [vmem:[%s725 + $0x30] sm:$0xff]
      %v1203 = vld [vmem:[%s725 + $0x38] sm:$0xff]
      %v1204 = vld [vmem:[%s725 + $0x40] sm:$0xff]
      %v1205 = vld [vmem:[%s725 + $0x48] sm:$0xff]
      %v1206 = vld [vmem:[%s725 + $0x50] sm:$0xff]
      %v1207 = vld [vmem:[%s725 + $0x58] sm:$0xff]
      %v1208 = vld [vmem:[%s725 + $0x60] sm:$0xff]
      %v1209 = vld [vmem:[%s725 + $0x68] sm:$0xff]
      %v1210 = vld [vmem:[%s725 + $0x70] sm:$0xff]
      %v1211 = vld [vmem:[%s725 + $0x78] sm:$0xff]
      %v1212 = vld [vmem:[%s729] sm:$0x3]
      %v1214 = vlaneseq
      %v1215 = vshrl.u32 %v1214, 7
      %v1216 = vsub.s32 0, %v1215
      %v1217 = vrot.slane %v1212, %v1216
      %v1218 = vlaneseq
      %v1219 = vshrl.u32 %v1218, 7
      %v1220 = vsub.s32 1, %v1219
      %v1221 = vrot.slane %v1212, %v1220
      %v1225 = vsel %vm873, %v1193, 0
      %v1228 = vsel %vm873, %v1194, 0
      %v1231 = vsel %vm873, %v1195, 0
      %1233 = vmatprep.subr.mxu0 0.0
      %1234 = vmatpush1.msra.mxu0 0.0
      %1235 = vmatprep.subr.mxu0 0.0
      %1236 = vmatpush1.msra.mxu0 0.0
      %1237 = vmatprep.subr.mxu0 0.0
      %1238 = vmatpush1.msra.mxu0 0.0
      %1239 = vmatprep.subr.mxu0 0.0
      %1240 = vmatpush1.msra.mxu0 0.0
      %1241 = vmatprep.subr.mxu0 0.0
      %1242 = vmatpush1.msra.mxu0 0.0
      %1243 = vmatprep.subr.mxu0 0.0
      %1244 = vmatpush1.msra.mxu0 0.0
      %1245 = vmatprep.subr.mxu0 0.0
      %1246 = vmatpush1.msra.mxu0 0.0
      %1247 = vmatprep.subr.mxu0 0.0
      %1248 = vmatpush1.msra.mxu0 0.0
      %1249 = vmatprep.subr.mxu0 %v1211
      %1250 = vmatpush1.msra.mxu0 %v1210
      %1251 = vmatprep.subr.mxu0 %v1209
      %1252 = vmatpush1.msra.mxu0 %v1208
      %1253 = vmatprep.subr.mxu0 %v1207
      %1254 = vmatpush1.msra.mxu0 %v1206
      %1255 = vmatprep.subr.mxu0 %v1205
      %1256 = vmatpush1.msra.mxu0 %v1204
      %1257 = vmatprep.subr.mxu0 %v1203
      %1258 = vmatpush1.msra.mxu0 %v1202
      %1259 = vmatprep.subr.mxu0 %v1201
      %1260 = vmatpush1.msra.mxu0 %v1200
      %1261 = vmatprep.subr.mxu0 %v1199
      %1262 = vmatpush1.msra.mxu0 %v1198
      %1263 = vmatprep.subr.mxu0 %v1197
      %1264 = vmatpush1.msra.mxu0 %v1196
      %1265 = vmatprep.subr.mxu0 0.0
      %1266 = vmatpush2.msra.mxu0 0.0
      %1267 = vmatprep.subr.mxu0 0.0
      %1268 = vmatpush2.msra.mxu0 0.0
      %1269 = vmatprep.subr.mxu0 0.0
      %1270 = vmatpush2.msra.mxu0 0.0
      %1271 = vmatprep.subr.mxu0 0.0
      %1272 = vmatpush2.msra.mxu0 0.0
      %1273 = vmatprep.subr.mxu0 0.0
      %1274 = vmatpush2.msra.mxu0 0.0
      %1275 = vmatprep.subr.mxu0 0.0
      %1276 = vmatpush2.msra.mxu0 0.0
      %1277 = vmatprep.subr.mxu0 0.0
      %1278 = vmatpush2.msra.mxu0 0.0
      %1279 = vmatprep.subr.mxu0 0.0
      %1280 = vmatpush2.msra.mxu0 0.0
      %1281 = vmatprep.subr.mxu0 0.0
      %1282 = vmatpush2.msra.mxu0 0.0
      %1283 = vmatprep.subr.mxu0 0.0
      %1284 = vmatpush2.msra.mxu0 0.0
      %1285 = vmatprep.subr.mxu0 0.0
      %1286 = vmatpush2.msra.mxu0 0.0
      %1287 = vmatprep.subr.mxu0 0.0
      %1288 = vmatpush2.msra.mxu0 0.0
      %1289 = vmatprep.subr.mxu0 0.0
      %1290 = vmatpush2.msra.mxu0 0.0
      %1291 = vmatprep.subr.mxu0 0.0
      %1292 = vmatpush2.msra.mxu0 0.0
      %1293 = vmatprep.subr.mxu0 0.0
      %1294 = vmatpush2.msra.mxu0 0.0
      %1295 = vmatprep.subr.mxu0 0.0
      %1296 = vmatpush2.msra.mxu0 0.0
      %1297 = vmatprep.mubr.f32.mxu0 0.0
      %1298 = vmatmul.mubr.f32.gmra.mxu0 %v1225
      %v1299 = vpop.f32.mrf.mxu0
      %v1300 = vadd.f32 %v1217, %v1299
      %v1301 = vpop.f32.mrf.mxu0
      %v1302 = vadd.f32 %v1221, %v1301
      %1303 = vmatprep.mubr.f32.mxu0 0.0
      %1304 = vmatmul.mubr.f32.gmra.mxu0 %v1228
      %v1305 = vpop.f32.mrf.mxu0
      %v1306 = vadd.f32 %v1217, %v1305
      %v1307 = vpop.f32.mrf.mxu0
      %v1308 = vadd.f32 %v1221, %v1307
      %1309 = vmatprep.mubr.f32.mxu0 0.0
      %1310 = vmatmul.mubr.f32.gmra.mxu0 %v1231
      %v1311 = vpop.f32.mrf.mxu0
      %v1312 = vadd.f32 %v1217, %v1311
      %v1313 = vpop.f32.mrf.mxu0
      %v1314 = vadd.f32 %v1221, %v1313
      %1315 = vdwg.mxu0
      %v1316 = vmul.f32 %v1300, 0.5
      %v1317 = vmul.f32 %v1302, 0.5
      %v1318 = vmul.f32 %v1306, 0.5
      %v1319 = vmul.f32 %v1308, 0.5
      %v1320 = vmul.f32 %v1312, 0.5
      %v1321 = vmul.f32 %v1314, 0.5
      %v1322 = vmul.f32 %v1300, 0.70710677
      %v1323 = vmul.f32 %v1302, 0.70710677
      %v1324 = vmul.f32 %v1306, 0.70710677
      %v1325 = vmul.f32 %v1308, 0.70710677
      %v1326 = vmul.f32 %v1312, 0.70710677
      %v1327 = vmul.f32 %v1314, 0.70710677
      %v1328 = vmax.f32 %v1322, -3.832507
      %v1329 = vmax.f32 %v1323, -3.832507
      %v1330 = vmax.f32 %v1324, -3.832507
      %v1331 = vmax.f32 %v1325, -3.832507
      %v1332 = vmax.f32 %v1326, -3.832507
      %v1333 = vmax.f32 %v1327, -3.832507
      %v1334 = vmin.f32 %v1328, 3.832507
      %v1335 = vmin.f32 %v1329, 3.832507
      %v1336 = vmin.f32 %v1330, 3.832507
      %v1337 = vmin.f32 %v1331, 3.832507
      %v1338 = vmin.f32 %v1332, 3.832507
      %v1339 = vmin.f32 %v1333, 3.832507
      %v1340 = vmul.f32 %v1334, %v1334
      %v1341 = vmul.f32 %v1335, %v1335
      %v1342 = vmul.f32 %v1336, %v1336
      %v1343 = vmul.f32 %v1337, %v1337
      %v1344 = vmul.f32 %v1338, %v1338
      %v1345 = vmul.f32 %v1339, %v1339
      %v1346 = vmul.f32 %v1340, 0.00022905065
      %v1347 = vmul.f32 %v1341, 0.00022905065
      %v1348 = vmul.f32 %v1342, 0.00022905065
      %v1349 = vmul.f32 %v1343, 0.00022905065
      %v1350 = vmul.f32 %v1344, 0.00022905065
      %v1351 = vmul.f32 %v1345, 0.00022905065
      %v1352 = vadd.f32 %v1346, 0.003408291
      %v1353 = vadd.f32 %v1347, 0.003408291
      %v1354 = vadd.f32 %v1348, 0.003408291
      %v1355 = vadd.f32 %v1349, 0.003408291
      %v1356 = vadd.f32 %v1350, 0.003408291
      %v1357 = vadd.f32 %v1351, 0.003408291
      %v1358 = vmul.f32 %v1352, %v1340
      %v1359 = vmul.f32 %v1353, %v1341
      %v1360 = vmul.f32 %v1354, %v1342
      %v1361 = vmul.f32 %v1355, %v1343
      %v1362 = vmul.f32 %v1356, %v1344
      %v1363 = vmul.f32 %v1357, %v1345
      %v1364 = vadd.f32 %v1358, 0.050955694
      %v1365 = vadd.f32 %v1359, 0.050955694
      %v1366 = vadd.f32 %v1360, 0.050955694
      %v1367 = vadd.f32 %v1361, 0.050955694
      %v1368 = vadd.f32 %v1362, 0.050955694
      %v1369 = vadd.f32 %v1363, 0.050955694
      %v1370 = vmul.f32 %v1364, %v1340
      %v1371 = vmul.f32 %v1365, %v1341
      %v1372 = vmul.f32 %v1366, %v1342
      %v1373 = vmul.f32 %v1367, %v1343
      %v1374 = vmul.f32 %v1368, %v1344
      %v1375 = vmul.f32 %v1369, %v1345
      %v1376 = vadd.f32 %v1370, 0.18520832
      %v1377 = vadd.f32 %v1371, 0.18520832
      %v1378 = vadd.f32 %v1372, 0.18520832
      %v1379 = vadd.f32 %v1373, 0.18520832
      %v1380 = vadd.f32 %v1374, 0.18520832
      %v1381 = vadd.f32 %v1375, 0.18520832
      %v1382 = vmul.f32 %v1376, %v1340
      %v1383 = vmul.f32 %v1377, %v1341
      %v1384 = vmul.f32 %v1378, %v1342
      %v1385 = vmul.f32 %v1379, %v1343
      %v1386 = vmul.f32 %v1380, %v1344
      %v1387 = vmul.f32 %v1381, %v1345
      %v1388 = vadd.f32 %v1382, 1.1283791
      %v1389 = vadd.f32 %v1383, 1.1283791
      %v1390 = vadd.f32 %v1384, 1.1283791
      %v1391 = vadd.f32 %v1385, 1.1283791
      %v1392 = vadd.f32 %v1386, 1.1283791
      %v1393 = vadd.f32 %v1387, 1.1283791
      %v1394 = vmul.f32 %v1334, %v1388
      %v1395 = vmul.f32 %v1335, %v1389
      %v1396 = vmul.f32 %v1336, %v1390
      %v1397 = vmul.f32 %v1337, %v1391
      %v1398 = vmul.f32 %v1338, %v1392
      %v1399 = vmul.f32 %v1339, %v1393
      %v1400 = vmul.f32 %v1340, -1.1791603e-07
      %v1401 = vmul.f32 %v1341, -1.1791603e-07
      %v1402 = vmul.f32 %v1342, -1.1791603e-07
      %v1403 = vmul.f32 %v1343, -1.1791603e-07
      %v1404 = vmul.f32 %v1344, -1.1791603e-07
      %v1405 = vmul.f32 %v1345, -1.1791603e-07
      %v1406 = vadd.f32 %v1400, 2.3547966e-05
      %v1407 = vadd.f32 %v1401, 2.3547966e-05
      %v1408 = vadd.f32 %v1402, 2.3547966e-05
      %v1409 = vadd.f32 %v1403, 2.3547966e-05
      %v1410 = vadd.f32 %v1404, 2.3547966e-05
      %v1411 = vadd.f32 %v1405, 2.3547966e-05
      %v1412 = vmul.f32 %v1406, %v1340
      %v1413 = vmul.f32 %v1407, %v1341
      %v1414 = vmul.f32 %v1408, %v1342
      %v1415 = vmul.f32 %v1409, %v1343
      %v1416 = vmul.f32 %v1410, %v1344
      %v1417 = vmul.f32 %v1411, %v1345
      %v1418 = vadd.f32 %v1412, 0.0010179626
      %v1419 = vadd.f32 %v1413, 0.0010179626
      %v1420 = vadd.f32 %v1414, 0.0010179626
      %v1421 = vadd.f32 %v1415, 0.0010179626
      %v1422 = vadd.f32 %v1416, 0.0010179626
      %v1423 = vadd.f32 %v1417, 0.0010179626
      %v1424 = vmul.f32 %v1418, %v1340
      %v1425 = vmul.f32 %v1419, %v1341
      %v1426 = vmul.f32 %v1420, %v1342
      %v1427 = vmul.f32 %v1421, %v1343
      %v1428 = vmul.f32 %v1422, %v1344
      %v1429 = vmul.f32 %v1423, %v1345
      %v1430 = vadd.f32 %v1424, 0.01407047
      %v1431 = vadd.f32 %v1425, 0.01407047
      %v1432 = vadd.f32 %v1426, 0.01407047
      %v1433 = vadd.f32 %v1427, 0.01407047
      %v1434 = vadd.f32 %v1428, 0.01407047
      %v1435 = vadd.f32 %v1429, 0.01407047
      %v1436 = vmul.f32 %v1430, %v1340
      %v1437 = vmul.f32 %v1431, %v1341
      %v1438 = vmul.f32 %v1432, %v1342
      %v1439 = vmul.f32 %v1433, %v1343
      %v1440 = vmul.f32 %v1434, %v1344
      %v1441 = vmul.f32 %v1435, %v1345
      %v1442 = vadd.f32 %v1436, 0.11098505
      %v1443 = vadd.f32 %v1437, 0.11098505
      %v1444 = vadd.f32 %v1438, 0.11098505
      %v1445 = vadd.f32 %v1439, 0.11098505
      %v1446 = vadd.f32 %v1440, 0.11098505
      %v1447 = vadd.f32 %v1441, 0.11098505
      %v1448 = vmul.f32 %v1442, %v1340
      %v1449 = vmul.f32 %v1443, %v1341
      %v1450 = vmul.f32 %v1444, %v1342
      %v1451 = vmul.f32 %v1445, %v1343
      %v1452 = vmul.f32 %v1446, %v1344
      %v1453 = vmul.f32 %v1447, %v1345
      %v1454 = vadd.f32 %v1448, 0.49746925
      %v1455 = vadd.f32 %v1449, 0.49746925
      %v1456 = vadd.f32 %v1450, 0.49746925
      %v1457 = vadd.f32 %v1451, 0.49746925
      %v1458 = vadd.f32 %v1452, 0.49746925
      %v1459 = vadd.f32 %v1453, 0.49746925
      %v1460 = vmul.f32 %v1454, %v1340
      %v1461 = vmul.f32 %v1455, %v1341
      %v1462 = vmul.f32 %v1456, %v1342
      %v1463 = vmul.f32 %v1457, %v1343
      %v1464 = vmul.f32 %v1458, %v1344
      %v1465 = vmul.f32 %v1459, %v1345
      %v1466 = vadd.f32 %v1460, 1.0
      %v1467 = vadd.f32 %v1461, 1.0
      %v1468 = vadd.f32 %v1462, 1.0
      %v1469 = vadd.f32 %v1463, 1.0
      %v1470 = vadd.f32 %v1464, 1.0
      %v1471 = vadd.f32 %v1465, 1.0
      %v1472 = vrcp.pop %v1466
      %v1473 = vmul.f32 %v1394, %v1472
      %v1474 = vrcp.pop %v1467
      %v1475 = vmul.f32 %v1395, %v1474
      %v1476 = vrcp.pop %v1468
      %v1477 = vmul.f32 %v1396, %v1476
      %v1478 = vrcp.pop %v1469
      %v1479 = vmul.f32 %v1397, %v1478
      %v1480 = vrcp.pop %v1470
      %v1481 = vmul.f32 %v1398, %v1480
      %v1482 = vrcp.pop %v1471
      %v1483 = vmul.f32 %v1399, %v1482
      %v1484 = vadd.f32 %v1473, 1.0
      %v1485 = vadd.f32 %v1475, 1.0
      %v1486 = vadd.f32 %v1477, 1.0
      %v1487 = vadd.f32 %v1479, 1.0
      %v1488 = vadd.f32 %v1481, 1.0
      %v1489 = vadd.f32 %v1483, 1.0
      %v1490 = vmul.f32 %v1316, %v1484
      %v1491 = vmul.f32 %v1317, %v1485
      %v1492 = vmul.f32 %v1318, %v1486
      %v1493 = vmul.f32 %v1319, %v1487
      %v1494 = vmul.f32 %v1320, %v1488
      %v1495 = vmul.f32 %v1321, %v1489
      %v1496 = vld [vmem:[%s734] sm:$0xff]
      %v1497 = vld [vmem:[%s734 + $0x8] sm:$0xff]
      %v1498 = vld [vmem:[%s734 + $0x10] sm:$0xff]
      %v1499 = vld [vmem:[%s734 + $0x18] sm:$0xff]
      %v1500 = vld [vmem:[%s734 + $0x20] sm:$0xff]
      %v1501 = vld [vmem:[%s734 + $0x28] sm:$0xff]
      %v1502 = vld [vmem:[%s734 + $0x30] sm:$0xff]
      %v1503 = vld [vmem:[%s734 + $0x38] sm:$0xff]
      %v1504 = vld [vmem:[%s734 + $0x40] sm:$0xff]
      %v1505 = vld [vmem:[%s734 + $0x48] sm:$0xff]
      %v1506 = vld [vmem:[%s734 + $0x50] sm:$0xff]
      %v1507 = vld [vmem:[%s734 + $0x58] sm:$0xff]
      %v1508 = vld [vmem:[%s734 + $0x60] sm:$0xff]
      %v1509 = vld [vmem:[%s734 + $0x68] sm:$0xff]
      %v1510 = vld [vmem:[%s734 + $0x70] sm:$0xff]
      %v1511 = vld [vmem:[%s734 + $0x78] sm:$0xff]
      %v1512 = vld [vmem:[%s734 + $0x80] sm:$0xff]
      %v1513 = vld [vmem:[%s734 + $0x88] sm:$0xff]
      %v1514 = vld [vmem:[%s734 + $0x90] sm:$0xff]
      %v1515 = vld [vmem:[%s734 + $0x98] sm:$0xff]
      %v1516 = vld [vmem:[%s734 + $0xa0] sm:$0xff]
      %v1517 = vld [vmem:[%s734 + $0xa8] sm:$0xff]
      %v1518 = vld [vmem:[%s734 + $0xb0] sm:$0xff]
      %v1519 = vld [vmem:[%s734 + $0xb8] sm:$0xff]
      %v1520 = vld [vmem:[%s734 + $0xc0] sm:$0xff]
      %v1521 = vld [vmem:[%s734 + $0xc8] sm:$0xff]
      %v1522 = vld [vmem:[%s734 + $0xd0] sm:$0xff]
      %v1523 = vld [vmem:[%s734 + $0xd8] sm:$0xff]
      %v1524 = vld [vmem:[%s734 + $0xe0] sm:$0xff]
      %v1525 = vld [vmem:[%s734 + $0xe8] sm:$0xff]
      %v1526 = vld [vmem:[%s734 + $0xf0] sm:$0xff]
      %v1527 = vld [vmem:[%s734 + $0xf8] sm:$0xff]
      %v1528 = vld [vmem:[%s737] sm:$0x1]
      %v1530 = vlaneseq
      %v1531 = vshrl.u32 %v1530, 7
      %v1532 = vsub.s32 0, %v1531
      %v1533 = vrot.slane %v1528, %v1532
      %1535 = vmatprep.subr.mxu0 0.0
      %1536 = vmatpush1.msra.mxu0 %v1511
      %1537 = vmatprep.subr.mxu0 0.0
      %1538 = vmatpush1.msra.mxu0 %v1510
      %1539 = vmatprep.subr.mxu0 0.0
      %1540 = vmatpush1.msra.mxu0 %v1509
      %1541 = vmatprep.subr.mxu0 0.0
      %1542 = vmatpush1.msra.mxu0 %v1508
      %1543 = vmatprep.subr.mxu0 0.0
      %1544 = vmatpush1.msra.mxu0 %v1507
      %1545 = vmatprep.subr.mxu0 0.0
      %1546 = vmatpush1.msra.mxu0 %v1506
      %1547 = vmatprep.subr.mxu0 0.0
      %1548 = vmatpush1.msra.mxu0 %v1505
      %1549 = vmatprep.subr.mxu0 0.0
      %1550 = vmatpush1.msra.mxu0 %v1504
      %1551 = vmatprep.subr.mxu0 0.0
      %1552 = vmatpush1.msra.mxu0 %v1503
      %1553 = vmatprep.subr.mxu0 0.0
      %1554 = vmatpush1.msra.mxu0 %v1502
      %1555 = vmatprep.subr.mxu0 0.0
      %1556 = vmatpush1.msra.mxu0 %v1501
      %1557 = vmatprep.subr.mxu0 0.0
      %1558 = vmatpush1.msra.mxu0 %v1500
      %1559 = vmatprep.subr.mxu0 0.0
      %1560 = vmatpush1.msra.mxu0 %v1499
      %1561 = vmatprep.subr.mxu0 0.0
      %1562 = vmatpush1.msra.mxu0 %v1498
      %1563 = vmatprep.subr.mxu0 0.0
      %1564 = vmatpush1.msra.mxu0 %v1497
      %1565 = vmatprep.subr.mxu0 0.0
      %1566 = vmatpush1.msra.mxu0 %v1496
      %1567 = vmatprep.subr.mxu0 0.0
      %1568 = vmatpush2.msra.mxu0 %v1527
      %1569 = vmatprep.subr.mxu0 0.0
      %1570 = vmatpush2.msra.mxu0 %v1526
      %1571 = vmatprep.subr.mxu0 0.0
      %1572 = vmatpush2.msra.mxu0 %v1525
      %1573 = vmatprep.subr.mxu0 0.0
      %1574 = vmatpush2.msra.mxu0 %v1524
      %1575 = vmatprep.subr.mxu0 0.0
      %1576 = vmatpush2.msra.mxu0 %v1523
      %1577 = vmatprep.subr.mxu0 0.0
      %1578 = vmatpush2.msra.mxu0 %v1522
      %1579 = vmatprep.subr.mxu0 0.0
      %1580 = vmatpush2.msra.mxu0 %v1521
      %1581 = vmatprep.subr.mxu0 0.0
      %1582 = vmatpush2.msra.mxu0 %v1520
      %1583 = vmatprep.subr.mxu0 0.0
      %1584 = vmatpush2.msra.mxu0 %v1519
      %1585 = vmatprep.subr.mxu0 0.0
      %1586 = vmatpush2.msra.mxu0 %v1518
      %1587 = vmatprep.subr.mxu0 0.0
      %1588 = vmatpush2.msra.mxu0 %v1517
      %1589 = vmatprep.subr.mxu0 0.0
      %1590 = vmatpush2.msra.mxu0 %v1516
      %1591 = vmatprep.subr.mxu0 0.0
      %1592 = vmatpush2.msra.mxu0 %v1515
      %1593 = vmatprep.subr.mxu0 0.0
      %1594 = vmatpush2.msra.mxu0 %v1514
      %1595 = vmatprep.subr.mxu0 0.0
      %1596 = vmatpush2.msra.mxu0 %v1513
      %1597 = vmatprep.subr.mxu0 0.0
      %1598 = vmatpush2.msra.mxu0 %v1512
      %1599 = vmatprep.mubr.f32.mxu0 %v1491
      %1600 = vmatmul.mubr.f32.gmra.mxu0 %v1490
      %v1601 = vpop.f32.mrf.mxu0
      %v1602 = vadd.f32 %v1533, %v1601
      %v1603 = vpop.f32.mrf.mxu0
      %1604 = vmatprep.mubr.f32.mxu0 %v1493
      %1605 = vmatmul.mubr.f32.gmra.mxu0 %v1492
      %v1606 = vpop.f32.mrf.mxu0
      %v1607 = vadd.f32 %v1533, %v1606
      %v1608 = vpop.f32.mrf.mxu0
      %1609 = vmatprep.mubr.f32.mxu0 %v1495
      %1610 = vmatmul.mubr.f32.gmra.mxu0 %v1494
      %v1611 = vpop.f32.mrf.mxu0
      %v1612 = vadd.f32 %v1533, %v1611
      %v1613 = vpop.f32.mrf.mxu0
      %1614 = vdwg.mxu0
      %v1615 = vadd.f32 %v1602, %v1148
      %v1616 = vadd.f32 %v1607, %v1149
      %v1617 = vadd.f32 %v1612, %v1150
      %1618 = vst.msk [vmem:[#allocation2] sm:$0xff] %vm873, %v1615
      %1619 = vst.msk [vmem:[#allocation2 + $0x8] sm:$0xff] %vm873, %v1616
      %1620 = vst.msk [vmem:[#allocation2 + $0x10] sm:$0xff] %vm873, %v1617
      %p1621 = scmp.eq.s32.totalorder %s30, 1
      // Predicated region
      $region101: #{vit_forward.1} parent=95 // pred_check
        %p1622 = pneg %p1621
      $region102: #{vit_forward.1} parent=95 // pred_check_branch
        %1624 = sbr.rel (%p1622) target = $region104
      $region103: #{vit_forward.1} parent=95 // pred_region
        %v1625 = vld [vmem:[#allocation2] sm:$0xff]
        %v1626 = vld [vmem:[#allocation2 + $0x8] sm:$0xff]
        %v1627 = vld [vmem:[#allocation2 + $0x10] sm:$0xff]
        %v1628 = vld [vmem:[%s13] sm:$0x1]
        %v1629 = vld [vmem:[%s14] sm:$0x1]
        %v1630 = vsel %vm873, %v1625, 0.0
        %1631 = vadd.xlane.f32.xlu0 %v1630
        %v1632 = vpop.xlane.xlu0 %1631
        %v1633 = vsel %vm873, %v1626, 0.0
        %1634 = vadd.xlane.f32.xlu0 %v1633
        %v1635 = vpop.xlane.xlu0 %1634
        %v1636 = vsel %vm873, %v1627, 0.0
        %1637 = vadd.xlane.f32.xlu0 %v1636
        %v1638 = vpop.xlane.xlu0 %1637
        %v1639 = vmul.f32 %v1632, %v883
        %v1640 = vmul.f32 %v1635, %v883
        %v1641 = vmul.f32 %v1638, %v883
        %v1642 = vsub.f32 %v1625, %v1639
        %v1643 = vsub.f32 %v1626, %v1640
        %v1644 = vsub.f32 %v1627, %v1641
        %v1645 = vmul.f32 %v1642, %v1642
        %v1646 = vmul.f32 %v1643, %v1643
        %v1647 = vmul.f32 %v1644, %v1644
        %v1648 = vsel %vm873, %v1645, 0.0
        %1649 = vadd.xlane.f32.xlu0 %v1648
        %v1650 = vpop.xlane.xlu0 %1649
        %v1651 = vsel %vm873, %v1646, 0.0
        %1652 = vadd.xlane.f32.xlu0 %v1651
        %v1653 = vpop.xlane.xlu0 %1652
        %v1654 = vsel %vm873, %v1647, 0.0
        %1655 = vadd.xlane.f32.xlu0 %v1654
        %v1656 = vpop.xlane.xlu0 %1655
        %v1657 = vmul.f32 %v1650, %v883
        %v1658 = vmul.f32 %v1653, %v883
        %v1659 = vmul.f32 %v1656, %v883
        %v1660 = vadd.f32 %v1657, 1e-05
        %v1661 = vadd.f32 %v1658, 1e-05
        %v1662 = vadd.f32 %v1659, 1e-05
        %v1663 = vrsqrt.pop %v1660
        %v1664 = vrsqrt.pop %v1661
        %v1665 = vrsqrt.pop %v1662
        %v1666 = vmul.f32 %v1642, %v1663
        %v1667 = vmul.f32 %v1643, %v1664
        %v1668 = vmul.f32 %v1644, %v1665
        %v1670 = vlaneseq
        %v1671 = vshrl.u32 %v1670, 7
        %v1672 = vsub.s32 0, %v1671
        %v1673 = vrot.slane %v1628, %v1672
        %v1675 = vmul.f32 %v1666, %v1673
        %v1676 = vmul.f32 %v1667, %v1673
        %v1677 = vmul.f32 %v1668, %v1673
        %v1679 = vlaneseq
        %v1680 = vshrl.u32 %v1679, 7
        %v1681 = vsub.s32 0, %v1680
        %v1682 = vrot.slane %v1629, %v1681
        %v1684 = vadd.f32 %v1675, %v1682
        %v1685 = vadd.f32 %v1676, %v1682
        %v1686 = vadd.f32 %v1677, %v1682
        %v1687 = vld [vmem:[%s15] sm:$0xff]
        %v1688 = vld [vmem:[%s15 + $0x8] sm:$0xff]
        %v1689 = vld [vmem:[%s15 + $0x10] sm:$0xff]
        %v1690 = vld [vmem:[%s15 + $0x18] sm:$0xff]
        %v1691 = vld [vmem:[%s15 + $0x20] sm:$0xff]
        %v1692 = vld [vmem:[%s15 + $0x28] sm:$0xff]
        %v1693 = vld [vmem:[%s15 + $0x30] sm:$0xff]
        %v1694 = vld [vmem:[%s15 + $0x38] sm:$0xff]
        %v1695 = vld [vmem:[%s16] sm:$0x1]
        %v1697 = vlaneseq
        %v1698 = vshrl.u32 %v1697, 7
        %v1699 = vsub.s32 0, %v1698
        %v1700 = vrot.slane %v1695, %v1699
        %v1703 = vsel %vm873, %v1684, 0
        %v1706 = vsel %vm873, %v1685, 0
        %v1709 = vsel %vm873, %v1686, 0
        %1711 = vmatprep.subr.mxu0 0.0
        %1712 = vmatpush1.msra.mxu0 0.0
        %1713 = vmatprep.subr.mxu0 0.0
        %1714 = vmatpush1.msra.mxu0 0.0
        %1715 = vmatprep.subr.mxu0 0.0
        %1716 = vmatpush1.msra.mxu0 0.0
        %1717 = vmatprep.subr.mxu0 0.0
        %1718 = vmatpush1.msra.mxu0 0.0
        %1719 = vmatprep.subr.mxu0 0.0
        %1720 = vmatpush1.msra.mxu0 0.0
        %1721 = vmatprep.subr.mxu0 0.0
        %1722 = vmatpush1.msra.mxu0 0.0
        %1723 = vmatprep.subr.mxu0 0.0
        %1724 = vmatpush1.msra.mxu0 0.0
        %1725 = vmatprep.subr.mxu0 0.0
        %1726 = vmatpush1.msra.mxu0 0.0
        %1727 = vmatprep.subr.mxu0 0.0
        %1728 = vmatpush1.msra.mxu0 %v1694
        %1729 = vmatprep.subr.mxu0 0.0
        %1730 = vmatpush1.msra.mxu0 %v1693
        %1731 = vmatprep.subr.mxu0 0.0
        %1732 = vmatpush1.msra.mxu0 %v1692
        %1733 = vmatprep.subr.mxu0 0.0
        %1734 = vmatpush1.msra.mxu0 %v1691
        %1735 = vmatprep.subr.mxu0 0.0
        %1736 = vmatpush1.msra.mxu0 %v1690
        %1737 = vmatprep.subr.mxu0 0.0
        %1738 = vmatpush1.msra.mxu0 %v1689
        %1739 = vmatprep.subr.mxu0 0.0
        %1740 = vmatpush1.msra.mxu0 %v1688
        %1741 = vmatprep.subr.mxu0 0.0
        %1742 = vmatpush1.msra.mxu0 %v1687
        %1743 = vmatprep.subr.mxu0 0.0
        %1744 = vmatpush2.msra.mxu0 0.0
        %1745 = vmatprep.subr.mxu0 0.0
        %1746 = vmatpush2.msra.mxu0 0.0
        %1747 = vmatprep.subr.mxu0 0.0
        %1748 = vmatpush2.msra.mxu0 0.0
        %1749 = vmatprep.subr.mxu0 0.0
        %1750 = vmatpush2.msra.mxu0 0.0
        %1751 = vmatprep.subr.mxu0 0.0
        %1752 = vmatpush2.msra.mxu0 0.0
        %1753 = vmatprep.subr.mxu0 0.0
        %1754 = vmatpush2.msra.mxu0 0.0
        %1755 = vmatprep.subr.mxu0 0.0
        %1756 = vmatpush2.msra.mxu0 0.0
        %1757 = vmatprep.subr.mxu0 0.0
        %1758 = vmatpush2.msra.mxu0 0.0
        %1759 = vmatprep.subr.mxu0 0.0
        %1760 = vmatpush2.msra.mxu0 0.0
        %1761 = vmatprep.subr.mxu0 0.0
        %1762 = vmatpush2.msra.mxu0 0.0
        %1763 = vmatprep.subr.mxu0 0.0
        %1764 = vmatpush2.msra.mxu0 0.0
        %1765 = vmatprep.subr.mxu0 0.0
        %1766 = vmatpush2.msra.mxu0 0.0
        %1767 = vmatprep.subr.mxu0 0.0
        %1768 = vmatpush2.msra.mxu0 0.0
        %1769 = vmatprep.subr.mxu0 0.0
        %1770 = vmatpush2.msra.mxu0 0.0
        %1771 = vmatprep.subr.mxu0 0.0
        %1772 = vmatpush2.msra.mxu0 0.0
        %1773 = vmatprep.subr.mxu0 0.0
        %1774 = vmatpush2.msra.mxu0 0.0
        %1775 = vmatprep.mubr.f32.mxu0 0.0
        %1776 = vmatmul.mubr.f32.gmra.mxu0 %v1703
        %v1777 = vpop.f32.mrf.mxu0
        %v1778 = vadd.f32 %v1700, %v1777
        %v1779 = vpop.f32.mrf.mxu0
        %1780 = vmatprep.mubr.f32.mxu0 0.0
        %1781 = vmatmul.mubr.f32.gmra.mxu0 %v1706
        %v1782 = vpop.f32.mrf.mxu0
        %v1783 = vadd.f32 %v1700, %v1782
        %v1784 = vpop.f32.mrf.mxu0
        %1785 = vmatprep.mubr.f32.mxu0 0.0
        %1786 = vmatmul.mubr.f32.gmra.mxu0 %v1709
        %v1787 = vpop.f32.mrf.mxu0
        %v1788 = vadd.f32 %v1700, %v1787
        %v1789 = vpop.f32.mrf.mxu0
        %1790 = vdwg.mxu0
        %v1791 = vld [vmem:[%s17] sm:$0xff]
        %v1792 = vld [vmem:[%s17 + $0x8] sm:$0xff]
        %v1793 = vld [vmem:[%s17 + $0x10] sm:$0xff]
        %v1794 = vld [vmem:[%s17 + $0x18] sm:$0xff]
        %v1795 = vld [vmem:[%s17 + $0x20] sm:$0xff]
        %v1796 = vld [vmem:[%s17 + $0x28] sm:$0xff]
        %v1797 = vld [vmem:[%s17 + $0x30] sm:$0xff]
        %v1798 = vld [vmem:[%s17 + $0x38] sm:$0xff]
        %v1799 = vld [vmem:[%s18] sm:$0x1]
        %v1801 = vlaneseq
        %v1802 = vshrl.u32 %v1801, 7
        %v1803 = vsub.s32 0, %v1802
        %v1804 = vrot.slane %v1799, %v1803
        %v1807 = vsel %vm873, %v1778, 0
        %v1810 = vsel %vm873, %v1783, 0
        %v1813 = vsel %vm873, %v1788, 0
        %1815 = vmatprep.subr.mxu0 0.0
        %1816 = vmatpush1.msra.mxu0 0.0
        %1817 = vmatprep.subr.mxu0 0.0
        %1818 = vmatpush1.msra.mxu0 0.0
        %1819 = vmatprep.subr.mxu0 0.0
        %1820 = vmatpush1.msra.mxu0 0.0
        %1821 = vmatprep.subr.mxu0 0.0
        %1822 = vmatpush1.msra.mxu0 0.0
        %1823 = vmatprep.subr.mxu0 0.0
        %1824 = vmatpush1.msra.mxu0 0.0
        %1825 = vmatprep.subr.mxu0 0.0
        %1826 = vmatpush1.msra.mxu0 0.0
        %1827 = vmatprep.subr.mxu0 0.0
        %1828 = vmatpush1.msra.mxu0 0.0
        %1829 = vmatprep.subr.mxu0 0.0
        %1830 = vmatpush1.msra.mxu0 0.0
        %1831 = vmatprep.subr.mxu0 0.0
        %1832 = vmatpush1.msra.mxu0 %v1798
        %1833 = vmatprep.subr.mxu0 0.0
        %1834 = vmatpush1.msra.mxu0 %v1797
        %1835 = vmatprep.subr.mxu0 0.0
        %1836 = vmatpush1.msra.mxu0 %v1796
        %1837 = vmatprep.subr.mxu0 0.0
        %1838 = vmatpush1.msra.mxu0 %v1795
        %1839 = vmatprep.subr.mxu0 0.0
        %1840 = vmatpush1.msra.mxu0 %v1794
        %1841 = vmatprep.subr.mxu0 0.0
        %1842 = vmatpush1.msra.mxu0 %v1793
        %1843 = vmatprep.subr.mxu0 0.0
        %1844 = vmatpush1.msra.mxu0 %v1792
        %1845 = vmatprep.subr.mxu0 0.0
        %1846 = vmatpush1.msra.mxu0 %v1791
        %1847 = vmatprep.subr.mxu0 0.0
        %1848 = vmatpush2.msra.mxu0 0.0
        %1849 = vmatprep.subr.mxu0 0.0
        %1850 = vmatpush2.msra.mxu0 0.0
        %1851 = vmatprep.subr.mxu0 0.0
        %1852 = vmatpush2.msra.mxu0 0.0
        %1853 = vmatprep.subr.mxu0 0.0
        %1854 = vmatpush2.msra.mxu0 0.0
        %1855 = vmatprep.subr.mxu0 0.0
        %1856 = vmatpush2.msra.mxu0 0.0
        %1857 = vmatprep.subr.mxu0 0.0
        %1858 = vmatpush2.msra.mxu0 0.0
        %1859 = vmatprep.subr.mxu0 0.0
        %1860 = vmatpush2.msra.mxu0 0.0
        %1861 = vmatprep.subr.mxu0 0.0
        %1862 = vmatpush2.msra.mxu0 0.0
        %1863 = vmatprep.subr.mxu0 0.0
        %1864 = vmatpush2.msra.mxu0 0.0
        %1865 = vmatprep.subr.mxu0 0.0
        %1866 = vmatpush2.msra.mxu0 0.0
        %1867 = vmatprep.subr.mxu0 0.0
        %1868 = vmatpush2.msra.mxu0 0.0
        %1869 = vmatprep.subr.mxu0 0.0
        %1870 = vmatpush2.msra.mxu0 0.0
        %1871 = vmatprep.subr.mxu0 0.0
        %1872 = vmatpush2.msra.mxu0 0.0
        %1873 = vmatprep.subr.mxu0 0.0
        %1874 = vmatpush2.msra.mxu0 0.0
        %1875 = vmatprep.subr.mxu0 0.0
        %1876 = vmatpush2.msra.mxu0 0.0
        %1877 = vmatprep.subr.mxu0 0.0
        %1878 = vmatpush2.msra.mxu0 0.0
        %1879 = vmatprep.mubr.f32.mxu0 0.0
        %1880 = vmatmul.mubr.f32.gmra.mxu0 %v1807
        %v1881 = vpop.f32.mrf.mxu0
        %v1882 = vadd.f32 %v1804, %v1881
        %v1883 = vpop.f32.mrf.mxu0
        %1884 = vmatprep.mubr.f32.mxu0 0.0
        %1885 = vmatmul.mubr.f32.gmra.mxu0 %v1810
        %v1886 = vpop.f32.mrf.mxu0
        %v1887 = vadd.f32 %v1804, %v1886
        %v1888 = vpop.f32.mrf.mxu0
        %1889 = vmatprep.mubr.f32.mxu0 0.0
        %1890 = vmatmul.mubr.f32.gmra.mxu0 %v1813
        %v1891 = vpop.f32.mrf.mxu0
        %v1892 = vadd.f32 %v1804, %v1891
        %v1893 = vpop.f32.mrf.mxu0
        %1894 = vdwg.mxu0
        %1895 = vst [vmem:[%s19] sm:$0xff] %v1882
        %1896 = vst [vmem:[%s19 + $0x8] sm:$0xff] %v1887
        %1897 = vst [vmem:[%s19 + $0x10] sm:$0xff] %v1892
      $region104: #{vit_forward.1} parent=95 // pred_fallthru
        _
      // Predicated region
      $region105: #{vit_forward.1} parent=95 // pred_check
        %p1898 = pneg %p492
      $region106: #{vit_forward.1} parent=95 // pred_check_branch
        %1900 = sbr.rel (%p1898) target = $region108
      $region107: #{vit_forward.1} parent=95 // pred_region
        _
      $region108: #{vit_forward.1} parent=95 // pred_fallthru
        _
      // Predicated region
      $region109: #{vit_forward.1} parent=95 // pred_check
        %p1901 = pneg %p492
      $region110: #{vit_forward.1} parent=95 // pred_check_branch
        %1903 = sbr.rel (%p1901) target = $region112
      $region111: #{vit_forward.1} parent=95 // pred_region
        _
      $region112: #{vit_forward.1} parent=95 // pred_fallthru
        _
    $region96: #{vit_forward.1} parent=5 // pred_fallthru
      _
    %p1904 = scmp.le.s32.totalorder 2, %s25
    // Predicated region
    $region113: #{vit_forward.1} parent=5 // pred_check
      %p1905 = pneg %p1904
    $region114: #{vit_forward.1} parent=5 // pred_check_branch
      %1907 = sbr.rel (%p1905) target = $region116
    $region115: #{vit_forward.1} parent=5 // pred_region
      %s1908 = ssub.s32 %s25, 2
    $region116: #{vit_forward.1} parent=5 // pred_fallthru
      _
  $region6: #{vit_forward.1} parent=0 // loop_footer
    %s29 = sadd.s32 1, %s25
  $region7: #{vit_forward.1} parent=0 // loop_footer_branch
    %24 = sbr.rel target = $region3
  $region8: #{vit_forward.1} parent=0 // loop_exit
    _

</llo_original>
